<compile_context>
chip_gen: v5e
topology: v5e:2x2
jax: 0.10.0
libtpu: 0.0.40
codegen_flags: <defaults>
</compile_context>

<pallas_src>
import jax
import jax.numpy as jnp
from jax.experimental import pallas as pl
from jax.experimental.pallas import tpu as pltpu


# ---------------------------------------------------------------------------
# Pallas kernels
# ---------------------------------------------------------------------------
def conv_pool_kernel(p_ref, w_ref, b_ref, o_ref):
    """Fused conv (as patch matmul) + bias + ReLU + 2x2 maxpool.

    p_ref : (1, 4, M, K) bf16   -- 4 = the four 2x2-pool corners, M pooled pixels
    w_ref : (K, C)       bf16
    b_ref : (1, C)       f32
    o_ref : (1, M, C)    bf16   -- pooled activation
    """
    w = w_ref[...]
    z = jnp.dot(p_ref[0, 0, :, :], w, preferred_element_type=jnp.float32)
    for k in range(1, 4):
        zk = jnp.dot(p_ref[0, k, :, :], w, preferred_element_type=jnp.float32)
        z = jnp.maximum(z, zk)                      # maxpool over the 4 corners
    z = jnp.maximum(z + b_ref[...], 0.0)            # bias + ReLU (commutes w/ max)
    o_ref[0, :, :] = z.astype(o_ref.dtype)


def fc_fused_kernel(x_ref, w1_ref, b1_ref, w2_ref, b2_ref, w3_ref, b3_ref, o_ref):
    """fc1 -> ReLU -> fc2 -> ReLU -> fc3, all in one kernel (weights in VMEM)."""
    h = jnp.dot(x_ref[...], w1_ref[...], preferred_element_type=jnp.float32) + b1_ref[...]
    h = jnp.maximum(h, 0.0).astype(w2_ref.dtype)
    h = jnp.dot(h, w2_ref[...], preferred_element_type=jnp.float32) + b2_ref[...]
    h = jnp.maximum(h, 0.0).astype(w3_ref.dtype)
    o = jnp.dot(h, w3_ref[...], preferred_element_type=jnp.float32) + b3_ref[...]
    o_ref[...] = o.astype(o_ref.dtype)


# ---------------------------------------------------------------------------
# Pallas wrappers
# ---------------------------------------------------------------------------
def conv_pool_call(patches, w, b):
    """patches: (N, 4, M, K) bf16 -> (N, M, C) bf16, gridded over the batch."""
    N, four, M, K = patches.shape
    assert four == 4
    C = w.shape[1]
    return pl.pallas_call(
        conv_pool_kernel,
        out_shape=jax.ShapeDtypeStruct((N, M, C), jnp.bfloat16),
        grid=(N,),
        in_specs=[
            pl.BlockSpec((1, 4, M, K), lambda i: (i, 0, 0, 0)),
            pl.BlockSpec((K, C), lambda i: (0, 0)),
            pl.BlockSpec((1, C), lambda i: (0, 0)),
        ],
        out_specs=pl.BlockSpec((1, M, C), lambda i: (i, 0, 0)),
        compiler_params=pltpu.CompilerParams(dimension_semantics=("parallel",)),
    )(patches, w, b)


def _row_tile(m, target=512):
    """Row tile: full array when tiny/odd, else a multiple of 8 dividing m."""
    if m <= target or m % 8 != 0:
        return m
    t = target
    while m % t != 0:
        t -= 8
    return t


def fc_fused_call(x, w1, b1, w2, b2, w3, b3):
    M, D0 = x.shape
    H1, H2, H3 = w1.shape[1], w2.shape[1], w3.shape[1]
    TM = _row_tile(M)
    return pl.pallas_call(
        fc_fused_kernel,
        out_shape=jax.ShapeDtypeStruct((M, H3), jnp.float32),
        grid=(M // TM,),
        in_specs=[
            pl.BlockSpec((TM, D0), lambda i: (i, 0)),
            pl.BlockSpec((D0, H1), lambda i: (0, 0)),
            pl.BlockSpec((1, H1), lambda i: (0, 0)),
            pl.BlockSpec((H1, H2), lambda i: (0, 0)),
            pl.BlockSpec((1, H2), lambda i: (0, 0)),
            pl.BlockSpec((H2, H3), lambda i: (0, 0)),
            pl.BlockSpec((1, H3), lambda i: (0, 0)),
        ],
        out_specs=pl.BlockSpec((TM, H3), lambda i: (i, 0)),
        compiler_params=pltpu.CompilerParams(dimension_semantics=("parallel",)),
    )(x, w1, b1, w2, b2, w3, b3)


# ---------------------------------------------------------------------------
# Glue: im2col with pool-corner row grouping (XLA ops, input side only)
# ---------------------------------------------------------------------------
def _im2col_pool_corners(x_nhwc, kh, kw):
    """Valid-conv patches, grouped by 2x2-pool corner.

    Returns (N, 4, (Ho//2)*(Wo//2), kh*kw*C); feature order (i, j, c) matches the
    (kh, kw, C_in, C_out) weight reshape; rows inside a corner are (i2*W2 + j2).
    """
    N, H, W, C = x_nhwc.shape
    Ho, Wo = H - kh + 1, W - kw + 1
    cols = []
    for i in range(kh):
        for j in range(kw):
            cols.append(x_nhwc[:, i:i + Ho, j:j + Wo, :])        # (N, Ho, Wo, C)
    patches = jnp.stack(cols, axis=3).reshape(N, Ho, Wo, kh * kw * C)
    corners = [
        patches[:, pi::2, pj::2, :].reshape(N, (Ho // 2) * (Wo // 2), kh * kw * C)
        for pi in (0, 1) for pj in (0, 1)
    ]
    return jnp.stack(corners, axis=1)                            # (N, 4, M, K)


# ---------------------------------------------------------------------------
# SimpleNet forward (expects params already run through prepare_params)
# ---------------------------------------------------------------------------
def simplenet_forward(x_nchw, p):
    N = x_nchw.shape[0]
    x = jnp.transpose(x_nchw, (0, 2, 3, 1)).astype(jnp.bfloat16)     # NCHW -> NHWC

    # conv1 (3->6, 5x5) + ReLU + 2x2 maxpool, fused
    p1 = _im2col_pool_corners(x, 5, 5)                               # (N, 4, 196, 75)
    a1 = conv_pool_call(p1, p["conv1_w"], p["conv1_b"])              # (N, 196, 6)
    a1 = a1.reshape(N, 14, 14, 6)                                    # pooled NHWC

    # conv2 (6->16, 5x5) + ReLU + 2x2 maxpool, fused
    p2 = _im2col_pool_corners(a1, 5, 5)                              # (N, 4, 25, 150)
    a2 = conv_pool_call(p2, p["conv2_w"], p["conv2_b"])              # (N, 25, 16)

    # flatten in NHWC order; fc1's weight was pre-permuted to consume it, so the
    # result matches PyTorch's NCHW x.view(-1, 400) exactly.
    flat = a2.reshape(N, 16 * 5 * 5)                                 # (N, 400) bf16

    # fc1 -> ReLU -> fc2 -> ReLU -> fc3, fused
    return fc_fused_call(flat, p["fc1_w"], p["fc1_b"],
                         p["fc2_w"], p["fc2_b"],
                         p["fc3_w"], p["fc3_b"])                     # (N, 10) f32


# ---------------------------------------------------------------------------
# One-time parameter preparation (no transposes in the traced forward)
# ---------------------------------------------------------------------------
def prepare_params(params):
    bf16, f32 = jnp.bfloat16, jnp.float32
    # Conv weights: (C_out, C_in, kh, kw) -> (kh*kw*C_in, C_out)
    c1 = jnp.transpose(params["conv1_w"], (2, 3, 1, 0)).reshape(75, 6).astype(bf16)
    c2 = jnp.transpose(params["conv2_w"], (2, 3, 1, 0)).reshape(150, 16).astype(bf16)
    # fc1: fold the NHWC-vs-NCHW flatten permutation into the weight:
    # PyTorch column index c*25 + h*5 + w  ->  our row index (h*5 + w)*16 + c.
    f1 = jnp.transpose(params["fc1_w"].reshape(120, 16, 5, 5), (2, 3, 1, 0))
    f1 = f1.reshape(400, 120).astype(bf16)
    f2 = jnp.transpose(params["fc2_w"], (1, 0)).astype(bf16)          # (120, 84)
    f3 = jnp.transpose(params["fc3_w"], (1, 0)).astype(bf16)          # (84, 10)
    return {
        "conv1_w": c1, "conv1_b": params["conv1_b"].reshape(1, 6).astype(f32),
        "conv2_w": c2, "conv2_b": params["conv2_b"].reshape(1, 16).astype(f32),
        "fc1_w": f1, "fc1_b": params["fc1_b"].reshape(1, 120).astype(f32),
        "fc2_w": f2, "fc2_b": params["fc2_b"].reshape(1, 84).astype(f32),
        "fc3_w": f3, "fc3_b": params["fc3_b"].reshape(1, 10).astype(f32),
    }


# ---------------------------------------------------------------------------
# Pure-JAX f32 reference (mirrors the PyTorch module exactly)
# ---------------------------------------------------------------------------
def simplenet_reference(x_nchw, params):
    def conv(x, w, b):
        y = jax.lax.conv_general_dilated(
            x, w, window_strides=(1, 1), padding="VALID",
            dimension_numbers=("NCHW", "OIHW", "NCHW"))
        return jnp.maximum(y + b[None, :, None, None], 0.0)

    def pool(x):
        return jax.lax.reduce_window(x, -jnp.inf, jax.lax.max,
                                     (1, 1, 2, 2), (1, 1, 2, 2), "VALID")

    x = pool(conv(x_nchw, params["conv1_w"], params["conv1_b"]))
    x = pool(conv(x, params["conv2_w"], params["conv2_b"]))
    x = x.reshape(x.shape[0], -1)
    x = jnp.maximum(x @ params["fc1_w"].T + params["fc1_b"], 0.0)
    x = jnp.maximum(x @ params["fc2_w"].T + params["fc2_b"], 0.0)
    return x @ params["fc3_w"].T + params["fc3_b"]


# ---------------------------------------------------------------------------
# Deterministic parameter init (PyTorch default-style uniform(-1/sqrt(fan_in)))
# ---------------------------------------------------------------------------
def init_params(key):
    def uni(k, shape, fan_in):
        bound = 1.0 / jnp.sqrt(fan_in)
        return jax.random.uniform(k, shape, jnp.float32, -bound, bound)

    ks = jax.random.split(key, 10)
    return {
        "conv1_w": uni(ks[0], (6, 3, 5, 5), 3 * 5 * 5),
        "conv1_b": uni(ks[1], (6,), 3 * 5 * 5),
        "conv2_w": uni(ks[2], (16, 6, 5, 5), 6 * 5 * 5),
        "conv2_b": uni(ks[3], (16,), 6 * 5 * 5),
        "fc1_w": uni(ks[4], (120, 400), 400),
        "fc1_b": uni(ks[5], (120,), 400),
        "fc2_w": uni(ks[6], (84, 120), 120),
        "fc2_b": uni(ks[7], (84,), 120),
        "fc3_w": uni(ks[8], (10, 84), 84),
        "fc3_b": uni(ks[9], (10,), 84),
    }


if __name__ == "__main__":
    key = jax.random.PRNGKey(0)
    k_x, k_p = jax.random.split(key)
    # CIFAR-10 sized input is required by the 16*5*5 flatten; small batch of 2.
    x = jax.random.normal(k_x, (2, 3, 32, 32), dtype=jnp.float32)
    params = init_params(k_p)
    prepped = prepare_params(params)      # one-time weight layout prep

    fwd = jax.jit(simplenet_forward)
    out = fwd(x, prepped)
    jax.block_until_ready(out)
    assert out.shape == (2, 10)

    # bf16 MXU path vs f32 reference: generous tolerance.
    ref = simplenet_reference(x, params)
    err = float(jnp.max(jnp.abs(out.astype(jnp.float32) - ref)))
    assert err < 5e-2, f"max abs err {err}"
    print("KERNEL_OK")
</pallas_src>

<mosaic_0001>
module attributes {stable_mosaic.version = 11 : i64} {
  func.func @conv_pool_kernel(%arg0: i32, %arg1: memref<1x4x196x75xbf16, #tpu.memory_space<vmem>>, %arg2: memref<75x6xbf16, #tpu.memory_space<vmem>>, %arg3: memref<1x6xf32, #tpu.memory_space<vmem>>, %arg4: memref<1x196x6xbf16, #tpu.memory_space<vmem>>) attributes {dimension_semantics = [#tpu.dimension_semantics<parallel>], iteration_bounds = array<i64: 2>, scalar_prefetch = 0 : i64, scratch_operands = 0 : i64, tpu.core_type = #tpu.core_type<tc>, window_params = [{transform_indices = @transform_0, window_bounds = array<i64: 1, 4, 196, 75>}, {pipeline_mode = #tpu.pipeline_mode<synchronous>, transform_indices = @transform_1, window_bounds = array<i64: 75, 6>}, {pipeline_mode = #tpu.pipeline_mode<synchronous>, transform_indices = @transform_2, window_bounds = array<i64: 1, 6>}, {transform_indices = @transform_3, window_bounds = array<i64: 1, 196, 6>}]} {
    %c0 = arith.constant 0 : index
    %c0_0 = arith.constant 0 : index
    %0 = vector.load %arg2[%c0, %c0_0] : memref<75x6xbf16, #tpu.memory_space<vmem>>, vector<75x6xbf16>
    %c0_1 = arith.constant 0 : index
    %c0_2 = arith.constant 0 : index
    %c0_3 = arith.constant 0 : index
    %c0_4 = arith.constant 0 : index
    %1 = vector.load %arg1[%c0_1, %c0_2, %c0_3, %c0_4] : memref<1x4x196x75xbf16, #tpu.memory_space<vmem>>, vector<1x1x196x75xbf16>
    %2 = vector.shape_cast %1 : vector<1x1x196x75xbf16> to vector<196x75xbf16>
    %cst = arith.constant dense<0.000000e+00> : vector<196x6xf32>
    %3 = tpu.matmul %2, %0, %cst {dimension_numbers = #tpu.dot_dimension_numbers<[1], [0], [0], [1], [0, 0, 1, 1], [], []>} : vector<196x75xbf16>, vector<75x6xbf16>, vector<196x6xf32> -> vector<196x6xf32>
    %c0_5 = arith.constant 0 : index
    %c1 = arith.constant 1 : index
    %c0_6 = arith.constant 0 : index
    %c0_7 = arith.constant 0 : index
    %4 = vector.load %arg1[%c0_5, %c1, %c0_6, %c0_7] : memref<1x4x196x75xbf16, #tpu.memory_space<vmem>>, vector<1x1x196x75xbf16>
    %5 = vector.shape_cast %4 : vector<1x1x196x75xbf16> to vector<196x75xbf16>
    %cst_8 = arith.constant dense<0.000000e+00> : vector<196x6xf32>
    %6 = tpu.matmul %5, %0, %cst_8 {dimension_numbers = #tpu.dot_dimension_numbers<[1], [0], [0], [1], [0, 0, 1, 1], [], []>} : vector<196x75xbf16>, vector<75x6xbf16>, vector<196x6xf32> -> vector<196x6xf32>
    %7 = arith.maximumf %3, %6 : vector<196x6xf32>
    %c0_9 = arith.constant 0 : index
    %c2 = arith.constant 2 : index
    %c0_10 = arith.constant 0 : index
    %c0_11 = arith.constant 0 : index
    %8 = vector.load %arg1[%c0_9, %c2, %c0_10, %c0_11] : memref<1x4x196x75xbf16, #tpu.memory_space<vmem>>, vector<1x1x196x75xbf16>
    %9 = vector.shape_cast %8 : vector<1x1x196x75xbf16> to vector<196x75xbf16>
    %cst_12 = arith.constant dense<0.000000e+00> : vector<196x6xf32>
    %10 = tpu.matmul %9, %0, %cst_12 {dimension_numbers = #tpu.dot_dimension_numbers<[1], [0], [0], [1], [0, 0, 1, 1], [], []>} : vector<196x75xbf16>, vector<75x6xbf16>, vector<196x6xf32> -> vector<196x6xf32>
    %11 = arith.maximumf %7, %10 : vector<196x6xf32>
    %c0_13 = arith.constant 0 : index
    %c3 = arith.constant 3 : index
    %c0_14 = arith.constant 0 : index
    %c0_15 = arith.constant 0 : index
    %12 = vector.load %arg1[%c0_13, %c3, %c0_14, %c0_15] : memref<1x4x196x75xbf16, #tpu.memory_space<vmem>>, vector<1x1x196x75xbf16>
    %13 = vector.shape_cast %12 : vector<1x1x196x75xbf16> to vector<196x75xbf16>
    %cst_16 = arith.constant dense<0.000000e+00> : vector<196x6xf32>
    %14 = tpu.matmul %13, %0, %cst_16 {dimension_numbers = #tpu.dot_dimension_numbers<[1], [0], [0], [1], [0, 0, 1, 1], [], []>} : vector<196x75xbf16>, vector<75x6xbf16>, vector<196x6xf32> -> vector<196x6xf32>
    %15 = arith.maximumf %11, %14 : vector<196x6xf32>
    %c0_17 = arith.constant 0 : index
    %c0_18 = arith.constant 0 : index
    %16 = vector.load %arg3[%c0_17, %c0_18] : memref<1x6xf32, #tpu.memory_space<vmem>>, vector<1x6xf32>
    %17 = vector.broadcast %16 : vector<1x6xf32> to vector<196x6xf32>
    %18 = arith.addf %15, %17 : vector<196x6xf32>
    %cst_19 = arith.constant 0.000000e+00 : f32
    %19 = vector.broadcast %cst_19 : f32 to vector<196x6xf32>
    %20 = arith.maximumf %18, %19 : vector<196x6xf32>
    %21 = arith.truncf %20 : vector<196x6xf32> to vector<196x6xbf16>
    %c0_20 = arith.constant 0 : index
    %c0_21 = arith.constant 0 : index
    %c0_22 = arith.constant 0 : index
    %22 = vector.load %arg4[%c0_20, %c0_21, %c0_22] : memref<1x196x6xbf16, #tpu.memory_space<vmem>>, vector<1x196x6xbf16>
    %23 = vector.shape_cast %22 : vector<1x196x6xbf16> to vector<196x6xbf16>
    %24 = vector.shape_cast %21 : vector<196x6xbf16> to vector<1x196x6xbf16>
    tpu.vector_store %arg4[%c0_20, %c0_21, %c0_22], %24 {strides = array<i32>} : memref<1x196x6xbf16, #tpu.memory_space<vmem>>, vector<1x196x6xbf16>,
    return
  }
  func.func @transform_0(%arg0: i32) -> (i32, i32, i32, i32) {
    %c0_i32 = arith.constant 0 : i32
    %c0_i32_0 = arith.constant 0 : i32
    %c0_i32_1 = arith.constant 0 : i32
    %c0_i32_2 = arith.constant 0 : i32
    return %arg0, %c0_i32, %c0_i32_0, %c0_i32_1 : i32, i32, i32, i32
  }
  func.func @transform_1(%arg0: i32) -> (i32, i32) {
    %c0_i32 = arith.constant 0 : i32
    %c0_i32_0 = arith.constant 0 : i32
    %c0_i32_1 = arith.constant 0 : i32
    return %c0_i32, %c0_i32_0 : i32, i32
  }
  func.func @transform_2(%arg0: i32) -> (i32, i32) {
    %c0_i32 = arith.constant 0 : i32
    %c0_i32_0 = arith.constant 0 : i32
    %c0_i32_1 = arith.constant 0 : i32
    return %c0_i32, %c0_i32_0 : i32, i32
  }
  func.func @transform_3(%arg0: i32) -> (i32, i32, i32) {
    %c0_i32 = arith.constant 0 : i32
    %c0_i32_0 = arith.constant 0 : i32
    %c0_i32_1 = arith.constant 0 : i32
    return %arg0, %c0_i32, %c0_i32_0 : i32, i32, i32
  }
}

module attributes {stable_mosaic.version = 11 : i64} {
  func.func @fc_fused_kernel(%arg0: i32, %arg1: memref<2x400xbf16, #tpu.memory_space<vmem>>, %arg2: memref<400x120xbf16, #tpu.memory_space<vmem>>, %arg3: memref<1x120xf32, #tpu.memory_space<vmem>>, %arg4: memref<120x84xbf16, #tpu.memory_space<vmem>>, %arg5: memref<1x84xf32, #tpu.memory_space<vmem>>, %arg6: memref<84x10xbf16, #tpu.memory_space<vmem>>, %arg7: memref<1x10xf32, #tpu.memory_space<vmem>>, %arg8: memref<2x10xf32, #tpu.memory_space<vmem>>) attributes {dimension_semantics = [#tpu.dimension_semantics<parallel>], iteration_bounds = array<i64: 1>, scalar_prefetch = 0 : i64, scratch_operands = 0 : i64, tpu.core_type = #tpu.core_type<tc>, window_params = [{transform_indices = @transform_0, window_bounds = array<i64: 2, 400>}, {pipeline_mode = #tpu.pipeline_mode<synchronous>, transform_indices = @transform_1, window_bounds = array<i64: 400, 120>}, {pipeline_mode = #tpu.pipeline_mode<synchronous>, transform_indices = @transform_2, window_bounds = array<i64: 1, 120>}, {pipeline_mode = #tpu.pipeline_mode<synchronous>, transform_indices = @transform_3, window_bounds = array<i64: 120, 84>}, {pipeline_mode = #tpu.pipeline_mode<synchronous>, transform_indices = @transform_4, window_bounds = array<i64: 1, 84>}, {pipeline_mode = #tpu.pipeline_mode<synchronous>, transform_indices = @transform_5, window_bounds = array<i64: 84, 10>}, {pipeline_mode = #tpu.pipeline_mode<synchronous>, transform_indices = @transform_6, window_bounds = array<i64: 1, 10>}, {transform_indices = @transform_7, window_bounds = array<i64: 2, 10>}]} {
    %c0 = arith.constant 0 : index
    %c0_0 = arith.constant 0 : index
    %0 = vector.load %arg1[%c0, %c0_0] : memref<2x400xbf16, #tpu.memory_space<vmem>>, vector<2x400xbf16>
    %c0_1 = arith.constant 0 : index
    %c0_2 = arith.constant 0 : index
    %1 = vector.load %arg2[%c0_1, %c0_2] : memref<400x120xbf16, #tpu.memory_space<vmem>>, vector<400x120xbf16>
    %cst = arith.constant dense<0.000000e+00> : vector<2x120xf32>
    %2 = tpu.matmul %0, %1, %cst {dimension_numbers = #tpu.dot_dimension_numbers<[1], [0], [0], [1], [0, 0, 1, 1], [], []>} : vector<2x400xbf16>, vector<400x120xbf16>, vector<2x120xf32> -> vector<2x120xf32>
    %c0_3 = arith.constant 0 : index
    %c0_4 = arith.constant 0 : index
    %3 = vector.load %arg3[%c0_3, %c0_4] : memref<1x120xf32, #tpu.memory_space<vmem>>, vector<1x120xf32>
    %4 = vector.broadcast %3 : vector<1x120xf32> to vector<2x120xf32>
    %5 = arith.addf %2, %4 : vector<2x120xf32>
    %cst_5 = arith.constant 0.000000e+00 : f32
    %6 = vector.broadcast %cst_5 : f32 to vector<2x120xf32>
    %7 = arith.maximumf %5, %6 : vector<2x120xf32>
    %8 = arith.truncf %7 : vector<2x120xf32> to vector<2x120xbf16>
    %c0_6 = arith.constant 0 : index
    %c0_7 = arith.constant 0 : index
    %9 = vector.load %arg4[%c0_6, %c0_7] : memref<120x84xbf16, #tpu.memory_space<vmem>>, vector<120x84xbf16>
    %cst_8 = arith.constant dense<0.000000e+00> : vector<2x84xf32>
    %10 = tpu.matmul %8, %9, %cst_8 {dimension_numbers = #tpu.dot_dimension_numbers<[1], [0], [0], [1], [0, 0, 1, 1], [], []>} : vector<2x120xbf16>, vector<120x84xbf16>, vector<2x84xf32> -> vector<2x84xf32>
    %c0_9 = arith.constant 0 : index
    %c0_10 = arith.constant 0 : index
    %11 = vector.load %arg5[%c0_9, %c0_10] : memref<1x84xf32, #tpu.memory_space<vmem>>, vector<1x84xf32>
    %12 = vector.broadcast %11 : vector<1x84xf32> to vector<2x84xf32>
    %13 = arith.addf %10, %12 : vector<2x84xf32>
    %cst_11 = arith.constant 0.000000e+00 : f32
    %14 = vector.broadcast %cst_11 : f32 to vector<2x84xf32>
    %15 = arith.maximumf %13, %14 : vector<2x84xf32>
    %16 = arith.truncf %15 : vector<2x84xf32> to vector<2x84xbf16>
    %c0_12 = arith.constant 0 : index
    %c0_13 = arith.constant 0 : index
    %17 = vector.load %arg6[%c0_12, %c0_13] : memref<84x10xbf16, #tpu.memory_space<vmem>>, vector<84x10xbf16>
    %cst_14 = arith.constant dense<0.000000e+00> : vector<2x10xf32>
    %18 = tpu.matmul %16, %17, %cst_14 {dimension_numbers = #tpu.dot_dimension_numbers<[1], [0], [0], [1], [0, 0, 1, 1], [], []>} : vector<2x84xbf16>, vector<84x10xbf16>, vector<2x10xf32> -> vector<2x10xf32>
    %c0_15 = arith.constant 0 : index
    %c0_16 = arith.constant 0 : index
    %19 = vector.load %arg7[%c0_15, %c0_16] : memref<1x10xf32, #tpu.memory_space<vmem>>, vector<1x10xf32>
    %20 = vector.broadcast %19 : vector<1x10xf32> to vector<2x10xf32>
    %21 = arith.addf %18, %20 : vector<2x10xf32>
    %c0_17 = arith.constant 0 : index
    %c0_18 = arith.constant 0 : index
    %22 = vector.load %arg8[%c0_17, %c0_18] : memref<2x10xf32, #tpu.memory_space<vmem>>, vector<2x10xf32>
    tpu.vector_store %arg8[%c0_17, %c0_18], %21 {strides = array<i32>} : memref<2x10xf32, #tpu.memory_space<vmem>>, vector<2x10xf32>,
    return
  }
  func.func @transform_0(%arg0: i32) -> (i32, i32) {
    %c0_i32 = arith.constant 0 : i32
    %c0_i32_0 = arith.constant 0 : i32
    return %arg0, %c0_i32 : i32, i32
  }
  func.func @transform_1(%arg0: i32) -> (i32, i32) {
    %c0_i32 = arith.constant 0 : i32
    %c0_i32_0 = arith.constant 0 : i32
    %c0_i32_1 = arith.constant 0 : i32
    return %c0_i32, %c0_i32_0 : i32, i32
  }
  func.func @transform_2(%arg0: i32) -> (i32, i32) {
    %c0_i32 = arith.constant 0 : i32
    %c0_i32_0 = arith.constant 0 : i32
    %c0_i32_1 = arith.constant 0 : i32
    return %c0_i32, %c0_i32_0 : i32, i32
  }
  func.func @transform_3(%arg0: i32) -> (i32, i32) {
    %c0_i32 = arith.constant 0 : i32
    %c0_i32_0 = arith.constant 0 : i32
    %c0_i32_1 = arith.constant 0 : i32
    return %c0_i32, %c0_i32_0 : i32, i32
  }
  func.func @transform_4(%arg0: i32) -> (i32, i32) {
    %c0_i32 = arith.constant 0 : i32
    %c0_i32_0 = arith.constant 0 : i32
    %c0_i32_1 = arith.constant 0 : i32
    return %c0_i32, %c0_i32_0 : i32, i32
  }
  func.func @transform_5(%arg0: i32) -> (i32, i32) {
    %c0_i32 = arith.constant 0 : i32
    %c0_i32_0 = arith.constant 0 : i32
    %c0_i32_1 = arith.constant 0 : i32
    return %c0_i32, %c0_i32_0 : i32, i32
  }
  func.func @transform_6(%arg0: i32) -> (i32, i32) {
    %c0_i32 = arith.constant 0 : i32
    %c0_i32_0 = arith.constant 0 : i32
    %c0_i32_1 = arith.constant 0 : i32
    return %c0_i32, %c0_i32_0 : i32, i32
  }
  func.func @transform_7(%arg0: i32) -> (i32, i32) {
    %c0_i32 = arith.constant 0 : i32
    %c0_i32_0 = arith.constant 0 : i32
    return %arg0, %c0_i32 : i32, i32
  }
}

module attributes {stable_mosaic.version = 11 : i64} {
  func.func @conv_pool_kernel(%arg0: i32, %arg1: memref<1x4x25x150xbf16, #tpu.memory_space<vmem>>, %arg2: memref<150x16xbf16, #tpu.memory_space<vmem>>, %arg3: memref<1x16xf32, #tpu.memory_space<vmem>>, %arg4: memref<1x25x16xbf16, #tpu.memory_space<vmem>>) attributes {dimension_semantics = [#tpu.dimension_semantics<parallel>], iteration_bounds = array<i64: 2>, scalar_prefetch = 0 : i64, scratch_operands = 0 : i64, tpu.core_type = #tpu.core_type<tc>, window_params = [{transform_indices = @transform_0, window_bounds = array<i64: 1, 4, 25, 150>}, {pipeline_mode = #tpu.pipeline_mode<synchronous>, transform_indices = @transform_1, window_bounds = array<i64: 150, 16>}, {pipeline_mode = #tpu.pipeline_mode<synchronous>, transform_indices = @transform_2, window_bounds = array<i64: 1, 16>}, {transform_indices = @transform_3, window_bounds = array<i64: 1, 25, 16>}]} {
    %c0 = arith.constant 0 : index
    %c0_0 = arith.constant 0 : index
    %0 = vector.load %arg2[%c0, %c0_0] : memref<150x16xbf16, #tpu.memory_space<vmem>>, vector<150x16xbf16>
    %c0_1 = arith.constant 0 : index
    %c0_2 = arith.constant 0 : index
    %c0_3 = arith.constant 0 : index
    %c0_4 = arith.constant 0 : index
    %1 = vector.load %arg1[%c0_1, %c0_2, %c0_3, %c0_4] : memref<1x4x25x150xbf16, #tpu.memory_space<vmem>>, vector<1x1x25x150xbf16>
    %2 = vector.shape_cast %1 : vector<1x1x25x150xbf16> to vector<25x150xbf16>
    %cst = arith.constant dense<0.000000e+00> : vector<25x16xf32>
    %3 = tpu.matmul %2, %0, %cst {dimension_numbers = #tpu.dot_dimension_numbers<[1], [0], [0], [1], [0, 0, 1, 1], [], []>} : vector<25x150xbf16>, vector<150x16xbf16>, vector<25x16xf32> -> vector<25x16xf32>
    %c0_5 = arith.constant 0 : index
    %c1 = arith.constant 1 : index
    %c0_6 = arith.constant 0 : index
    %c0_7 = arith.constant 0 : index
    %4 = vector.load %arg1[%c0_5, %c1, %c0_6, %c0_7] : memref<1x4x25x150xbf16, #tpu.memory_space<vmem>>, vector<1x1x25x150xbf16>
    %5 = vector.shape_cast %4 : vector<1x1x25x150xbf16> to vector<25x150xbf16>
    %cst_8 = arith.constant dense<0.000000e+00> : vector<25x16xf32>
    %6 = tpu.matmul %5, %0, %cst_8 {dimension_numbers = #tpu.dot_dimension_numbers<[1], [0], [0], [1], [0, 0, 1, 1], [], []>} : vector<25x150xbf16>, vector<150x16xbf16>, vector<25x16xf32> -> vector<25x16xf32>
    %7 = arith.maximumf %3, %6 : vector<25x16xf32>
    %c0_9 = arith.constant 0 : index
    %c2 = arith.constant 2 : index
    %c0_10 = arith.constant 0 : index
    %c0_11 = arith.constant 0 : index
    %8 = vector.load %arg1[%c0_9, %c2, %c0_10, %c0_11] : memref<1x4x25x150xbf16, #tpu.memory_space<vmem>>, vector<1x1x25x150xbf16>
    %9 = vector.shape_cast %8 : vector<1x1x25x150xbf16> to vector<25x150xbf16>
    %cst_12 = arith.constant dense<0.000000e+00> : vector<25x16xf32>
    %10 = tpu.matmul %9, %0, %cst_12 {dimension_numbers = #tpu.dot_dimension_numbers<[1], [0], [0], [1], [0, 0, 1, 1], [], []>} : vector<25x150xbf16>, vector<150x16xbf16>, vector<25x16xf32> -> vector<25x16xf32>
    %11 = arith.maximumf %7, %10 : vector<25x16xf32>
    %c0_13 = arith.constant 0 : index
    %c3 = arith.constant 3 : index
    %c0_14 = arith.constant 0 : index
    %c0_15 = arith.constant 0 : index
    %12 = vector.load %arg1[%c0_13, %c3, %c0_14, %c0_15] : memref<1x4x25x150xbf16, #tpu.memory_space<vmem>>, vector<1x1x25x150xbf16>
    %13 = vector.shape_cast %12 : vector<1x1x25x150xbf16> to vector<25x150xbf16>
    %cst_16 = arith.constant dense<0.000000e+00> : vector<25x16xf32>
    %14 = tpu.matmul %13, %0, %cst_16 {dimension_numbers = #tpu.dot_dimension_numbers<[1], [0], [0], [1], [0, 0, 1, 1], [], []>} : vector<25x150xbf16>, vector<150x16xbf16>, vector<25x16xf32> -> vector<25x16xf32>
    %15 = arith.maximumf %11, %14 : vector<25x16xf32>
    %c0_17 = arith.constant 0 : index
    %c0_18 = arith.constant 0 : index
    %16 = vector.load %arg3[%c0_17, %c0_18] : memref<1x16xf32, #tpu.memory_space<vmem>>, vector<1x16xf32>
    %17 = vector.broadcast %16 : vector<1x16xf32> to vector<25x16xf32>
    %18 = arith.addf %15, %17 : vector<25x16xf32>
    %cst_19 = arith.constant 0.000000e+00 : f32
    %19 = vector.broadcast %cst_19 : f32 to vector<25x16xf32>
    %20 = arith.maximumf %18, %19 : vector<25x16xf32>
    %21 = arith.truncf %20 : vector<25x16xf32> to vector<25x16xbf16>
    %c0_20 = arith.constant 0 : index
    %c0_21 = arith.constant 0 : index
    %c0_22 = arith.constant 0 : index
    %22 = vector.load %arg4[%c0_20, %c0_21, %c0_22] : memref<1x25x16xbf16, #tpu.memory_space<vmem>>, vector<1x25x16xbf16>
    %23 = vector.shape_cast %22 : vector<1x25x16xbf16> to vector<25x16xbf16>
    %24 = vector.shape_cast %21 : vector<25x16xbf16> to vector<1x25x16xbf16>
    tpu.vector_store %arg4[%c0_20, %c0_21, %c0_22], %24 {strides = array<i32>} : memref<1x25x16xbf16, #tpu.memory_space<vmem>>, vector<1x25x16xbf16>,
    return
  }
  func.func @transform_0(%arg0: i32) -> (i32, i32, i32, i32) {
    %c0_i32 = arith.constant 0 : i32
    %c0_i32_0 = arith.constant 0 : i32
    %c0_i32_1 = arith.constant 0 : i32
    %c0_i32_2 = arith.constant 0 : i32
    return %arg0, %c0_i32, %c0_i32_0, %c0_i32_1 : i32, i32, i32, i32
  }
  func.func @transform_1(%arg0: i32) -> (i32, i32) {
    %c0_i32 = arith.constant 0 : i32
    %c0_i32_0 = arith.constant 0 : i32
    %c0_i32_1 = arith.constant 0 : i32
    return %c0_i32, %c0_i32_0 : i32, i32
  }
  func.func @transform_2(%arg0: i32) -> (i32, i32) {
    %c0_i32 = arith.constant 0 : i32
    %c0_i32_0 = arith.constant 0 : i32
    %c0_i32_1 = arith.constant 0 : i32
    return %c0_i32, %c0_i32_0 : i32, i32
  }
  func.func @transform_3(%arg0: i32) -> (i32, i32, i32) {
    %c0_i32 = arith.constant 0 : i32
    %c0_i32_0 = arith.constant 0 : i32
    %c0_i32_1 = arith.constant 0 : i32
    return %arg0, %c0_i32, %c0_i32_0 : i32, i32, i32
  }
}

</mosaic_0001>

<llo_original>
// kernel: simplenet_forward.3
$region0: #{simplenet_forward.3}
  #allocation0 [shape = 'u32[]', space=smem, size = 0x4, offset = 0x4, fixed_abs, tag = 'smem constant byte address 0x4 - core index']
  #allocation1 [shape = 'u32[72,128]{1,0:T(1,128)}', space=vmem, size = 0x9000, scoped, tag = 'internal scratch']
  %s0 = inlined_call_operand.vmem [shape: bf16[2,4,196,75], index: 0, kind: input, shape index: {}]
  %s1 = inlined_call_operand.vmem [shape: bf16[75,6], index: 1, kind: input, shape index: {}]
  %s2 = inlined_call_operand.vmem [shape: f32[1,6], index: 2, kind: input, shape index: {}]
  %s3 = inlined_call_operand.vmem [shape: bf16[2,196,6], index: 3, kind: output, shape index: {}]
  %s4 = sld [smem:[#allocation0]]
  $region45: #{simplenet_forward.3} parent=0
    _
  %s6 = ssub.s32 1, %s4
  %s7 = scalar_select 0, %s6, %s4
  loop: start=0, step=1, limit=4
  $region2: #{simplenet_forward.3} parent=0 // loop_pre_header
    _
  $region3: #{simplenet_forward.3} parent=0 // loop_header
    %s9 = sphi 0, %s13
    %p10 = scmp.ge.s32.totalorder %s9, 4
    %s19 = sphi 0, %s21
    %s22 = sphi 0, %s19
    %s23 = sphi 0, %s22
    %s39 = sphi 0, %s23
    %s43 = sphi 0, %s43
    %s45 = sphi 0, %s43
    %s46 = sphi 0, %s45
    %s60 = sphi 0, %s46
    %s64 = sphi 0, %s64
    %s66 = sphi 0, %s64
    %s67 = sphi 0, %s66
    %s81 = sphi 0, %s67
    %s87 = sphi 0, %s89
    %s90 = sphi 0, %s87
    %s91 = sphi 0, %s90
    %s107 = sphi 0, %s91
  $region4: #{simplenet_forward.3} parent=0 // loop_header_branch
    %12 = sbr.rel (%p10) target = $region8
  $region5: #{simplenet_forward.3} parent=0 // loop_body
    %s14 = ssub.s32 %s9, 1
    %s15 = ssub.s32 %s9, 2
    %s16 = sadd.s32 %s9, 1
    %s17 = ssub.s32 %s9, %s16
    %p18 = scmp.eq.s32.totalorder %s17, 0
    %s20 = sadd.s32 %s19, 1
    %s21 = scalar_select %p18, %s19, %s20
    %p24 = pneg %p18
    %p25 = scmp.eq.s32.totalorder %s9, 1
    %p26 = por %p24, %p25
    %p27 = scmp.ne.s32.totalorder %s19, %s22
    %p28 = scmp.eq.s32.totalorder %s9, 0
    %p29 = por %p27, %p28
    %p30 = scmp.ne.s32.totalorder %s19, %s22
    %p31 = scmp.eq.s32.totalorder %s14, 1
    %p32 = por %p30, %p31
    %p33 = scmp.ne.s32.totalorder %s22, %s23
    %p34 = scmp.eq.s32.totalorder %s14, 0
    %p35 = por %p33, %p34
    %p36 = scmp.ne.s32.totalorder %s22, %s23
    %p37 = scmp.eq.s32.totalorder %s15, 1
    %p38 = por %p36, %p37
    %p40 = scmp.ne.s32.totalorder %s23, %s39
    %p41 = scmp.eq.s32.totalorder %s15, 0
    %p42 = por %p40, %p41
    %s44 = sadd.s32 %s43, 1
    %p47 = scmp.eq.s32.totalorder %s9, 1
    %p48 = scmp.ne.s32.totalorder %s43, %s45
    %p49 = scmp.eq.s32.totalorder %s9, 0
    %p50 = por %p48, %p49
    %p51 = scmp.ne.s32.totalorder %s43, %s45
    %p52 = scmp.eq.s32.totalorder %s14, 1
    %p53 = por %p51, %p52
    %p54 = scmp.ne.s32.totalorder %s45, %s46
    %p55 = scmp.eq.s32.totalorder %s14, 0
    %p56 = por %p54, %p55
    %p57 = scmp.ne.s32.totalorder %s45, %s46
    %p58 = scmp.eq.s32.totalorder %s15, 1
    %p59 = por %p57, %p58
    %p61 = scmp.ne.s32.totalorder %s46, %s60
    %p62 = scmp.eq.s32.totalorder %s15, 0
    %p63 = por %p61, %p62
    %s65 = sadd.s32 %s64, 1
    %p68 = scmp.eq.s32.totalorder %s9, 1
    %p69 = scmp.ne.s32.totalorder %s64, %s66
    %p70 = scmp.eq.s32.totalorder %s9, 0
    %p71 = por %p69, %p70
    %p72 = scmp.ne.s32.totalorder %s64, %s66
    %p73 = scmp.eq.s32.totalorder %s14, 1
    %p74 = por %p72, %p73
    %p75 = scmp.ne.s32.totalorder %s66, %s67
    %p76 = scmp.eq.s32.totalorder %s14, 0
    %p77 = por %p75, %p76
    %p78 = scmp.ne.s32.totalorder %s66, %s67
    %p79 = scmp.eq.s32.totalorder %s15, 1
    %p80 = por %p78, %p79
    %p82 = scmp.ne.s32.totalorder %s67, %s81
    %p83 = scmp.eq.s32.totalorder %s15, 0
    %p84 = por %p82, %p83
    %s85 = ssub.s32 %s9, %s16
    %p86 = scmp.eq.s32.totalorder %s85, 0
    %s88 = sadd.s32 %s87, 1
    %s89 = scalar_select %p86, %s87, %s88
    %p92 = pneg %p86
    %p93 = scmp.eq.s32.totalorder %s9, 1
    %p94 = por %p92, %p93
    %p95 = scmp.ne.s32.totalorder %s87, %s90
    %p96 = scmp.eq.s32.totalorder %s9, 0
    %p97 = por %p95, %p96
    %p98 = scmp.ne.s32.totalorder %s87, %s90
    %p99 = scmp.eq.s32.totalorder %s14, 1
    %p100 = por %p98, %p99
    %p101 = scmp.ne.s32.totalorder %s90, %s91
    %p102 = scmp.eq.s32.totalorder %s14, 0
    %p103 = por %p101, %p102
    %p104 = scmp.ne.s32.totalorder %s90, %s91
    %p105 = scmp.eq.s32.totalorder %s15, 1
    %p106 = por %p104, %p105
    %p108 = scmp.ne.s32.totalorder %s91, %s107
    %p109 = scmp.eq.s32.totalorder %s15, 0
    %p110 = por %p108, %p109
    %p111 = scmp.le.s32.totalorder 1, %s9
    %p112 = scmp.lt.s32.totalorder %s9, 3
    %p113 = pnand %p111, %p112
    %p114 = pneg %p113
    // Predicated region
    $region9: #{simplenet_forward.3} parent=5 // pred_check
      _
    $region10: #{simplenet_forward.3} parent=5 // pred_check_branch
      %116 = sbr.rel (%p113) target = $region12
    $region11: #{simplenet_forward.3} parent=5 // pred_region
      %s117 = ssub.s32 %s9, 1
      // Predicated region
      $region13: #{simplenet_forward.3} parent=11 // pred_check
        %p118 = pneg %p56
      $region14: #{simplenet_forward.3} parent=11 // pred_check_branch
        %120 = sbr.rel (%p118) target = $region16
      $region15: #{simplenet_forward.3} parent=11 // pred_region
        _
      $region16: #{simplenet_forward.3} parent=11 // pred_fallthru
        _
      // Predicated region
      $region17: #{simplenet_forward.3} parent=11 // pred_check
        %p121 = pneg %p77
      $region18: #{simplenet_forward.3} parent=11 // pred_check_branch
        %123 = sbr.rel (%p121) target = $region20
      $region19: #{simplenet_forward.3} parent=11 // pred_region
        _
      $region20: #{simplenet_forward.3} parent=11 // pred_fallthru
        _
    $region12: #{simplenet_forward.3} parent=5 // pred_fallthru
      _
    %p124 = scmp.lt.s32.totalorder %s9, 2
    // Predicated region
    $region21: #{simplenet_forward.3} parent=5 // pred_check
      %p125 = pneg %p124
    $region22: #{simplenet_forward.3} parent=5 // pred_check_branch
      %127 = sbr.rel (%p125) target = $region24
    $region23: #{simplenet_forward.3} parent=5 // pred_region
      // Predicated region
      $region25: #{simplenet_forward.3} parent=23 // pred_check
        %p128 = pneg %p29
      $region26: #{simplenet_forward.3} parent=23 // pred_check_branch
        %130 = sbr.rel (%p128) target = $region28
      $region27: #{simplenet_forward.3} parent=23 // pred_region
        %p131 = scmp.lt.s32.totalorder %s9, 1
        %s132 = scalar_select %p131, %s9, 1
        %s133 = smul.addr %s132, 100
        %s134 = smul.addr %s133, 4
        %s135 = scalar_lea.vmem %s0, %s134
      $region28: #{simplenet_forward.3} parent=23 // pred_fallthru
        _
    $region24: #{simplenet_forward.3} parent=5 // pred_fallthru
      _
    %p136 = scmp.le.s32.totalorder 1, %s9
    %p137 = scmp.lt.s32.totalorder %s9, 3
    %p138 = pnand %p136, %p137
    %p139 = pneg %p138
    // Predicated region
    $region29: #{simplenet_forward.3} parent=5 // pred_check
      _
    $region30: #{simplenet_forward.3} parent=5 // pred_check_branch
      %141 = sbr.rel (%p138) target = $region32
    $region31: #{simplenet_forward.3} parent=5 // pred_region
      %s142 = ssub.s32 %s9, 1
      %p143 = scmp.lt.s32.totalorder %s14, 1
      %s144 = scalar_select %p143, %s14, 1
      %s145 = smul.addr %s144, 100
      %s146 = smul.addr %s145, 4
      %s147 = scalar_lea.vmem %s0, %s146
      %p148 = pneg %p35
      %p149 = pneg %p32
      %p150 = pneg %p56
      %p151 = pneg %p53
      %p152 = pneg %p77
      %p153 = pneg %p74
      %p154 = pneg %p103
      %p155 = pneg %p100
      %p156 = scmp.lt.s32.totalorder %s14, 1
      %s157 = scalar_select %p156, %s14, 1
      %s158 = smul.addr %s157, 25
      %s159 = smul.addr %s158, 4
      %s160 = scalar_lea.vmem %s3, %s159
      %p161 = scmp.lt.s32.totalorder %s14, 1
      %s162 = scalar_select %p161, %s14, 1
      %s163 = smul.addr %s162, 100
      %s164 = smul.addr %s163, 4
      %s165 = scalar_lea.vmem %s0, %s164
      %p166 = scmp.lt.s32.totalorder %s14, 1
      %s167 = scalar_select %p166, %s14, 1
      %s168 = smul.addr %s167, 25
      %s169 = smul.addr %s168, 4
      %s170 = scalar_lea.vmem %s3, %s169
      %v172 = vld [vmem:[%s1] sm:$0xf]
      %v173 = vld [vmem:[%s1 + $0x4] sm:$0xf]
      %v174 = vld [vmem:[%s1 + $0x8] sm:$0xf]
      %v175 = vld [vmem:[%s1 + $0xc] sm:$0xf]
      %v176 = vld [vmem:[%s1 + $0x10] sm:$0xf]
      %v177 = vld [vmem:[%s1 + $0x14] sm:$0xf]
      %v178 = vld [vmem:[%s1 + $0x18] sm:$0xf]
      %v179 = vld [vmem:[%s1 + $0x1c] sm:$0xf]
      %v180 = vld [vmem:[%s1 + $0x20] sm:$0xf]
      %v181 = vld [vmem:[%s1 + $0x24] sm:$0x3]
      %v182 = vld [vmem:[%s165] sm:$0xf]
      %v183 = vld [vmem:[%s165 + $0x4] sm:$0xf]
      %v184 = vld [vmem:[%s165 + $0x8] sm:$0xf]
      %v185 = vld [vmem:[%s165 + $0xc] sm:$0xf]
      %v186 = vld [vmem:[%s165 + $0x10] sm:$0xf]
      %v187 = vld [vmem:[%s165 + $0x14] sm:$0xf]
      %v188 = vld [vmem:[%s165 + $0x18] sm:$0xf]
      %v189 = vld [vmem:[%s165 + $0x1c] sm:$0xf]
      %v190 = vld [vmem:[%s165 + $0x20] sm:$0xf]
      %v191 = vld [vmem:[%s165 + $0x24] sm:$0xf]
      %v192 = vld [vmem:[%s165 + $0x28] sm:$0xf]
      %v193 = vld [vmem:[%s165 + $0x2c] sm:$0xf]
      %v194 = vld [vmem:[%s165 + $0x30] sm:$0xf]
      %v195 = vld [vmem:[%s165 + $0x34] sm:$0xf]
      %v196 = vld [vmem:[%s165 + $0x38] sm:$0xf]
      %v197 = vld [vmem:[%s165 + $0x3c] sm:$0xf]
      %v198 = vld [vmem:[%s165 + $0x40] sm:$0xf]
      %v199 = vld [vmem:[%s165 + $0x44] sm:$0xf]
      %v200 = vld [vmem:[%s165 + $0x48] sm:$0xf]
      %v201 = vld [vmem:[%s165 + $0x4c] sm:$0xf]
      %v202 = vld [vmem:[%s165 + $0x50] sm:$0xf]
      %v203 = vld [vmem:[%s165 + $0x54] sm:$0xf]
      %v204 = vld [vmem:[%s165 + $0x58] sm:$0xf]
      %v205 = vld [vmem:[%s165 + $0x5c] sm:$0xf]
      %v206 = vld [vmem:[%s165 + $0x60] sm:$0x3]
      %v232 = vunpack.c.l.b16 %v182
      %v233 = vunpack.c.l.b16 %v183
      %v234 = vunpack.c.l.b16 %v184
      %v235 = vunpack.c.l.b16 %v185
      %v236 = vunpack.c.l.b16 %v186
      %v237 = vunpack.c.l.b16 %v187
      %v238 = vunpack.c.l.b16 %v188
      %v239 = vunpack.c.l.b16 %v189
      %v240 = vunpack.c.l.b16 %v190
      %v241 = vunpack.c.l.b16 %v191
      %v242 = vunpack.c.l.b16 %v192
      %v243 = vunpack.c.l.b16 %v193
      %v244 = vunpack.c.l.b16 %v194
      %v245 = vunpack.c.l.b16 %v195
      %v246 = vunpack.c.l.b16 %v196
      %v247 = vunpack.c.l.b16 %v197
      %v248 = vunpack.c.l.b16 %v198
      %v249 = vunpack.c.l.b16 %v199
      %v250 = vunpack.c.l.b16 %v200
      %v251 = vunpack.c.l.b16 %v201
      %v252 = vunpack.c.l.b16 %v202
      %v253 = vunpack.c.l.b16 %v203
      %v254 = vunpack.c.l.b16 %v204
      %v255 = vunpack.c.l.b16 %v205
      %v256 = vunpack.c.l.b16 %v206
      %v257 = vpack.c.b16 %v233, %v232
      %v258 = vpack.c.b16 %v235, %v234
      %v259 = vpack.c.b16 %v237, %v236
      %v260 = vpack.c.b16 %v239, %v238
      %v261 = vpack.c.b16 %v241, %v240
      %v262 = vpack.c.b16 %v243, %v242
      %v263 = vpack.c.b16 %v245, %v244
      %v264 = vpack.c.b16 %v247, %v246
      %v265 = vpack.c.b16 %v249, %v248
      %v266 = vpack.c.b16 %v251, %v250
      %v267 = vpack.c.b16 %v253, %v252
      %v268 = vpack.c.b16 %v255, %v254
      %v269 = vpack.c.b16 %v256, %v256
      %v280 = vunpack.c.l.b16 %v172
      %v281 = vunpack.c.l.b16 %v173
      %v282 = vunpack.c.l.b16 %v174
      %v283 = vunpack.c.l.b16 %v175
      %v284 = vunpack.c.l.b16 %v176
      %v285 = vunpack.c.l.b16 %v177
      %v286 = vunpack.c.l.b16 %v178
      %v287 = vunpack.c.l.b16 %v179
      %v288 = vunpack.c.l.b16 %v180
      %v289 = vunpack.c.l.b16 %v181
      %v290 = vpack.c.b16 %v281, %v280
      %v291 = vpack.c.b16 %v283, %v282
      %v292 = vpack.c.b16 %v285, %v284
      %v293 = vpack.c.b16 %v287, %v286
      %v294 = vpack.c.b16 %v289, %v288
      %vm299 = vcmask 613376
      %v301 = vsel %vm299, %v257, 0
      %v304 = vsel %vm299, %v258, 0
      %v307 = vsel %vm299, %v259, 0
      %v310 = vsel %vm299, %v260, 0
      %v313 = vsel %vm299, %v261, 0
      %v316 = vsel %vm299, %v262, 0
      %v319 = vsel %vm299, %v263, 0
      %v322 = vsel %vm299, %v264, 0
      %v325 = vsel %vm299, %v265, 0
      %v328 = vsel %vm299, %v266, 0
      %v331 = vsel %vm299, %v267, 0
      %v334 = vsel %vm299, %v268, 0
      %v337 = vsel %vm299, %v269, 0
      %vm339 = vcmask 1044480
      %vm340 = vcmask 1045504
      %v341 = vsel %vm339, 4294967295, 65535
      %v342 = vsel %vm340, %v341, 0
      %v344 = vand.u32 %v294, %v342
      %346 = vmatpush.bf16.msra.mxu0 0
      %347 = vmatpush.bf16.msra.mxu0 0
      %348 = vmatpush.bf16.msra.mxu0 0
      %349 = vmatpush.bf16.msra.mxu0 %v344
      %350 = vmatpush.bf16.msra.mxu0 %v293
      %351 = vmatpush.bf16.msra.mxu0 %v292
      %352 = vmatpush.bf16.msra.mxu0 %v291
      %353 = vmatpush.bf16.msra.mxu0 %v290
      %354 = vmatmul.bf16.gmra.mxu0 %v301
      %v355 = vpop.f32.mrf.mxu0
      %v356 = vadd.f32 0.0, %v355
      %v357 = vpop.f32.mrf.mxu0
      %v358 = vadd.f32 0.0, %v357
      %359 = vmatmul.bf16.gmra.mxu0 %v304
      %v360 = vpop.f32.mrf.mxu0
      %v361 = vadd.f32 0.0, %v360
      %v362 = vpop.f32.mrf.mxu0
      %v363 = vadd.f32 0.0, %v362
      %364 = vmatmul.bf16.gmra.mxu0 %v307
      %v365 = vpop.f32.mrf.mxu0
      %v366 = vadd.f32 0.0, %v365
      %v367 = vpop.f32.mrf.mxu0
      %v368 = vadd.f32 0.0, %v367
      %369 = vmatmul.bf16.gmra.mxu0 %v310
      %v370 = vpop.f32.mrf.mxu0
      %v371 = vadd.f32 0.0, %v370
      %v372 = vpop.f32.mrf.mxu0
      %v373 = vadd.f32 0.0, %v372
      %374 = vmatmul.bf16.gmra.mxu0 %v313
      %v375 = vpop.f32.mrf.mxu0
      %v376 = vadd.f32 0.0, %v375
      %v377 = vpop.f32.mrf.mxu0
      %v378 = vadd.f32 0.0, %v377
      %379 = vmatmul.bf16.gmra.mxu0 %v316
      %v380 = vpop.f32.mrf.mxu0
      %v381 = vadd.f32 0.0, %v380
      %v382 = vpop.f32.mrf.mxu0
      %v383 = vadd.f32 0.0, %v382
      %384 = vmatmul.bf16.gmra.mxu0 %v319
      %v385 = vpop.f32.mrf.mxu0
      %v386 = vadd.f32 0.0, %v385
      %v387 = vpop.f32.mrf.mxu0
      %v388 = vadd.f32 0.0, %v387
      %389 = vmatmul.bf16.gmra.mxu0 %v322
      %v390 = vpop.f32.mrf.mxu0
      %v391 = vadd.f32 0.0, %v390
      %v392 = vpop.f32.mrf.mxu0
      %v393 = vadd.f32 0.0, %v392
      %394 = vmatmul.bf16.gmra.mxu0 %v325
      %v395 = vpop.f32.mrf.mxu0
      %v396 = vadd.f32 0.0, %v395
      %v397 = vpop.f32.mrf.mxu0
      %v398 = vadd.f32 0.0, %v397
      %399 = vmatmul.bf16.gmra.mxu0 %v328
      %v400 = vpop.f32.mrf.mxu0
      %v401 = vadd.f32 0.0, %v400
      %v402 = vpop.f32.mrf.mxu0
      %v403 = vadd.f32 0.0, %v402
      %404 = vmatmul.bf16.gmra.mxu0 %v331
      %v405 = vpop.f32.mrf.mxu0
      %v406 = vadd.f32 0.0, %v405
      %v407 = vpop.f32.mrf.mxu0
      %v408 = vadd.f32 0.0, %v407
      %409 = vmatmul.bf16.gmra.mxu0 %v334
      %v410 = vpop.f32.mrf.mxu0
      %v411 = vadd.f32 0.0, %v410
      %v412 = vpop.f32.mrf.mxu0
      %v413 = vadd.f32 0.0, %v412
      %414 = vmatmul.bf16.gmra.mxu0 %v337
      %v415 = vpop.f32.mrf.mxu0
      %v416 = vadd.f32 0.0, %v415
      %v417 = vpop.f32.mrf.mxu0
      %418 = vdwg.mxu0
      %s419 = scalar_lea.vmem %s165, 100
      %v420 = vld [vmem:[%s419] sm:$0xf]
      %v421 = vld [vmem:[%s419 + $0x4] sm:$0xf]
      %v422 = vld [vmem:[%s419 + $0x8] sm:$0xf]
      %v423 = vld [vmem:[%s419 + $0xc] sm:$0xf]
      %v424 = vld [vmem:[%s419 + $0x10] sm:$0xf]
      %v425 = vld [vmem:[%s419 + $0x14] sm:$0xf]
      %v426 = vld [vmem:[%s419 + $0x18] sm:$0xf]
      %v427 = vld [vmem:[%s419 + $0x1c] sm:$0xf]
      %v428 = vld [vmem:[%s419 + $0x20] sm:$0xf]
      %v429 = vld [vmem:[%s419 + $0x24] sm:$0xf]
      %v430 = vld [vmem:[%s419 + $0x28] sm:$0xf]
      %v431 = vld [vmem:[%s419 + $0x2c] sm:$0xf]
      %v432 = vld [vmem:[%s419 + $0x30] sm:$0xf]
      %v433 = vld [vmem:[%s419 + $0x34] sm:$0xf]
      %v434 = vld [vmem:[%s419 + $0x38] sm:$0xf]
      %v435 = vld [vmem:[%s419 + $0x3c] sm:$0xf]
      %v436 = vld [vmem:[%s419 + $0x40] sm:$0xf]
      %v437 = vld [vmem:[%s419 + $0x44] sm:$0xf]
      %v438 = vld [vmem:[%s419 + $0x48] sm:$0xf]
      %v439 = vld [vmem:[%s419 + $0x4c] sm:$0xf]
      %v440 = vld [vmem:[%s419 + $0x50] sm:$0xf]
      %v441 = vld [vmem:[%s419 + $0x54] sm:$0xf]
      %v442 = vld [vmem:[%s419 + $0x58] sm:$0xf]
      %v443 = vld [vmem:[%s419 + $0x5c] sm:$0xf]
      %v444 = vld [vmem:[%s419 + $0x60] sm:$0x3]
      %v470 = vunpack.c.l.b16 %v420
      %v471 = vunpack.c.l.b16 %v421
      %v472 = vunpack.c.l.b16 %v422
      %v473 = vunpack.c.l.b16 %v423
      %v474 = vunpack.c.l.b16 %v424
      %v475 = vunpack.c.l.b16 %v425
      %v476 = vunpack.c.l.b16 %v426
      %v477 = vunpack.c.l.b16 %v427
      %v478 = vunpack.c.l.b16 %v428
      %v479 = vunpack.c.l.b16 %v429
      %v480 = vunpack.c.l.b16 %v430
      %v481 = vunpack.c.l.b16 %v431
      %v482 = vunpack.c.l.b16 %v432
      %v483 = vunpack.c.l.b16 %v433
      %v484 = vunpack.c.l.b16 %v434
      %v485 = vunpack.c.l.b16 %v435
      %v486 = vunpack.c.l.b16 %v436
      %v487 = vunpack.c.l.b16 %v437
      %v488 = vunpack.c.l.b16 %v438
      %v489 = vunpack.c.l.b16 %v439
      %v490 = vunpack.c.l.b16 %v440
      %v491 = vunpack.c.l.b16 %v441
      %v492 = vunpack.c.l.b16 %v442
      %v493 = vunpack.c.l.b16 %v443
      %v494 = vunpack.c.l.b16 %v444
      %v495 = vpack.c.b16 %v471, %v470
      %v496 = vpack.c.b16 %v473, %v472
      %v497 = vpack.c.b16 %v475, %v474
      %v498 = vpack.c.b16 %v477, %v476
      %v499 = vpack.c.b16 %v479, %v478
      %v500 = vpack.c.b16 %v481, %v480
      %v501 = vpack.c.b16 %v483, %v482
      %v502 = vpack.c.b16 %v485, %v484
      %v503 = vpack.c.b16 %v487, %v486
      %v504 = vpack.c.b16 %v489, %v488
      %v505 = vpack.c.b16 %v491, %v490
      %v506 = vpack.c.b16 %v493, %v492
      %v507 = vpack.c.b16 %v494, %v494
      %v509 = vsel %vm299, %v495, 0
      %v512 = vsel %vm299, %v496, 0
      %v515 = vsel %vm299, %v497, 0
      %v518 = vsel %vm299, %v498, 0
      %v521 = vsel %vm299, %v499, 0
      %v524 = vsel %vm299, %v500, 0
      %v527 = vsel %vm299, %v501, 0
      %v530 = vsel %vm299, %v502, 0
      %v533 = vsel %vm299, %v503, 0
      %v536 = vsel %vm299, %v504, 0
      %v539 = vsel %vm299, %v505, 0
      %v542 = vsel %vm299, %v506, 0
      %v545 = vsel %vm299, %v507, 0
      %547 = vmatpush.bf16.msra.mxu0 0
      %548 = vmatpush.bf16.msra.mxu0 0
      %549 = vmatpush.bf16.msra.mxu0 0
      %550 = vmatpush.bf16.msra.mxu0 %v344
      %551 = vmatpush.bf16.msra.mxu0 %v293
      %552 = vmatpush.bf16.msra.mxu0 %v292
      %553 = vmatpush.bf16.msra.mxu0 %v291
      %554 = vmatpush.bf16.msra.mxu0 %v290
      %555 = vmatmul.bf16.gmra.mxu0 %v509
      %v556 = vpop.f32.mrf.mxu0
      %v557 = vadd.f32 0.0, %v556
      %v558 = vpop.f32.mrf.mxu0
      %v559 = vadd.f32 0.0, %v558
      %560 = vmatmul.bf16.gmra.mxu0 %v512
      %v561 = vpop.f32.mrf.mxu0
      %v562 = vadd.f32 0.0, %v561
      %v563 = vpop.f32.mrf.mxu0
      %v564 = vadd.f32 0.0, %v563
      %565 = vmatmul.bf16.gmra.mxu0 %v515
      %v566 = vpop.f32.mrf.mxu0
      %v567 = vadd.f32 0.0, %v566
      %v568 = vpop.f32.mrf.mxu0
      %v569 = vadd.f32 0.0, %v568
      %570 = vmatmul.bf16.gmra.mxu0 %v518
      %v571 = vpop.f32.mrf.mxu0
      %v572 = vadd.f32 0.0, %v571
      %v573 = vpop.f32.mrf.mxu0
      %v574 = vadd.f32 0.0, %v573
      %575 = vmatmul.bf16.gmra.mxu0 %v521
      %v576 = vpop.f32.mrf.mxu0
      %v577 = vadd.f32 0.0, %v576
      %v578 = vpop.f32.mrf.mxu0
      %v579 = vadd.f32 0.0, %v578
      %580 = vmatmul.bf16.gmra.mxu0 %v524
      %v581 = vpop.f32.mrf.mxu0
      %v582 = vadd.f32 0.0, %v581
      %v583 = vpop.f32.mrf.mxu0
      %v584 = vadd.f32 0.0, %v583
      %585 = vmatmul.bf16.gmra.mxu0 %v527
      %v586 = vpop.f32.mrf.mxu0
      %v587 = vadd.f32 0.0, %v586
      %v588 = vpop.f32.mrf.mxu0
      %v589 = vadd.f32 0.0, %v588
      %590 = vmatmul.bf16.gmra.mxu0 %v530
      %v591 = vpop.f32.mrf.mxu0
      %v592 = vadd.f32 0.0, %v591
      %v593 = vpop.f32.mrf.mxu0
      %v594 = vadd.f32 0.0, %v593
      %595 = vmatmul.bf16.gmra.mxu0 %v533
      %v596 = vpop.f32.mrf.mxu0
      %v597 = vadd.f32 0.0, %v596
      %v598 = vpop.f32.mrf.mxu0
      %v599 = vadd.f32 0.0, %v598
      %600 = vmatmul.bf16.gmra.mxu0 %v536
      %v601 = vpop.f32.mrf.mxu0
      %v602 = vadd.f32 0.0, %v601
      %v603 = vpop.f32.mrf.mxu0
      %v604 = vadd.f32 0.0, %v603
      %605 = vmatmul.bf16.gmra.mxu0 %v539
      %v606 = vpop.f32.mrf.mxu0
      %v607 = vadd.f32 0.0, %v606
      %v608 = vpop.f32.mrf.mxu0
      %v609 = vadd.f32 0.0, %v608
      %610 = vmatmul.bf16.gmra.mxu0 %v542
      %v611 = vpop.f32.mrf.mxu0
      %v612 = vadd.f32 0.0, %v611
      %v613 = vpop.f32.mrf.mxu0
      %v614 = vadd.f32 0.0, %v613
      %615 = vmatmul.bf16.gmra.mxu0 %v545
      %v616 = vpop.f32.mrf.mxu0
      %v617 = vadd.f32 0.0, %v616
      %v618 = vpop.f32.mrf.mxu0
      %619 = vdwg.mxu0
      %v620 = vmax.f32 %v356, %v557
      %v621 = vmax.f32 %v358, %v559
      %v622 = vmax.f32 %v361, %v562
      %v623 = vmax.f32 %v363, %v564
      %v624 = vmax.f32 %v366, %v567
      %v625 = vmax.f32 %v368, %v569
      %v626 = vmax.f32 %v371, %v572
      %v627 = vmax.f32 %v373, %v574
      %v628 = vmax.f32 %v376, %v577
      %v629 = vmax.f32 %v378, %v579
      %v630 = vmax.f32 %v381, %v582
      %v631 = vmax.f32 %v383, %v584
      %v632 = vmax.f32 %v386, %v587
      %v633 = vmax.f32 %v388, %v589
      %v634 = vmax.f32 %v391, %v592
      %v635 = vmax.f32 %v393, %v594
      %v636 = vmax.f32 %v396, %v597
      %v637 = vmax.f32 %v398, %v599
      %v638 = vmax.f32 %v401, %v602
      %v639 = vmax.f32 %v403, %v604
      %v640 = vmax.f32 %v406, %v607
      %v641 = vmax.f32 %v408, %v609
      %v642 = vmax.f32 %v411, %v612
      %v643 = vmax.f32 %v413, %v614
      %v644 = vmax.f32 %v416, %v617
      %s645 = scalar_lea.vmem %s165, 200
      %v646 = vld [vmem:[%s645] sm:$0xf]
      %v647 = vld [vmem:[%s645 + $0x4] sm:$0xf]
      %v648 = vld [vmem:[%s645 + $0x8] sm:$0xf]
      %v649 = vld [vmem:[%s645 + $0xc] sm:$0xf]
      %v650 = vld [vmem:[%s645 + $0x10] sm:$0xf]
      %v651 = vld [vmem:[%s645 + $0x14] sm:$0xf]
      %v652 = vld [vmem:[%s645 + $0x18] sm:$0xf]
      %v653 = vld [vmem:[%s645 + $0x1c] sm:$0xf]
      %v654 = vld [vmem:[%s645 + $0x20] sm:$0xf]
      %v655 = vld [vmem:[%s645 + $0x24] sm:$0xf]
      %v656 = vld [vmem:[%s645 + $0x28] sm:$0xf]
      %v657 = vld [vmem:[%s645 + $0x2c] sm:$0xf]
      %v658 = vld [vmem:[%s645 + $0x30] sm:$0xf]
      %v659 = vld [vmem:[%s645 + $0x34] sm:$0xf]
      %v660 = vld [vmem:[%s645 + $0x38] sm:$0xf]
      %v661 = vld [vmem:[%s645 + $0x3c] sm:$0xf]
      %v662 = vld [vmem:[%s645 + $0x40] sm:$0xf]
      %v663 = vld [vmem:[%s645 + $0x44] sm:$0xf]
      %v664 = vld [vmem:[%s645 + $0x48] sm:$0xf]
      %v665 = vld [vmem:[%s645 + $0x4c] sm:$0xf]
      %v666 = vld [vmem:[%s645 + $0x50] sm:$0xf]
      %v667 = vld [vmem:[%s645 + $0x54] sm:$0xf]
      %v668 = vld [vmem:[%s645 + $0x58] sm:$0xf]
      %v669 = vld [vmem:[%s645 + $0x5c] sm:$0xf]
      %v670 = vld [vmem:[%s645 + $0x60] sm:$0x3]
      %v696 = vunpack.c.l.b16 %v646
      %v697 = vunpack.c.l.b16 %v647
      %v698 = vunpack.c.l.b16 %v648
      %v699 = vunpack.c.l.b16 %v649
      %v700 = vunpack.c.l.b16 %v650
      %v701 = vunpack.c.l.b16 %v651
      %v702 = vunpack.c.l.b16 %v652
      %v703 = vunpack.c.l.b16 %v653
      %v704 = vunpack.c.l.b16 %v654
      %v705 = vunpack.c.l.b16 %v655
      %v706 = vunpack.c.l.b16 %v656
      %v707 = vunpack.c.l.b16 %v657
      %v708 = vunpack.c.l.b16 %v658
      %v709 = vunpack.c.l.b16 %v659
      %v710 = vunpack.c.l.b16 %v660
      %v711 = vunpack.c.l.b16 %v661
      %v712 = vunpack.c.l.b16 %v662
      %v713 = vunpack.c.l.b16 %v663
      %v714 = vunpack.c.l.b16 %v664
      %v715 = vunpack.c.l.b16 %v665
      %v716 = vunpack.c.l.b16 %v666
      %v717 = vunpack.c.l.b16 %v667
      %v718 = vunpack.c.l.b16 %v668
      %v719 = vunpack.c.l.b16 %v669
      %v720 = vunpack.c.l.b16 %v670
      %v721 = vpack.c.b16 %v697, %v696
      %v722 = vpack.c.b16 %v699, %v698
      %v723 = vpack.c.b16 %v701, %v700
      %v724 = vpack.c.b16 %v703, %v702
      %v725 = vpack.c.b16 %v705, %v704
      %v726 = vpack.c.b16 %v707, %v706
      %v727 = vpack.c.b16 %v709, %v708
      %v728 = vpack.c.b16 %v711, %v710
      %v729 = vpack.c.b16 %v713, %v712
      %v730 = vpack.c.b16 %v715, %v714
      %v731 = vpack.c.b16 %v717, %v716
      %v732 = vpack.c.b16 %v719, %v718
      %v733 = vpack.c.b16 %v720, %v720
      %v735 = vsel %vm299, %v721, 0
      %v738 = vsel %vm299, %v722, 0
      %v741 = vsel %vm299, %v723, 0
      %v744 = vsel %vm299, %v724, 0
      %v747 = vsel %vm299, %v725, 0
      %v750 = vsel %vm299, %v726, 0
      %v753 = vsel %vm299, %v727, 0
      %v756 = vsel %vm299, %v728, 0
      %v759 = vsel %vm299, %v729, 0
      %v762 = vsel %vm299, %v730, 0
      %v765 = vsel %vm299, %v731, 0
      %v768 = vsel %vm299, %v732, 0
      %v771 = vsel %vm299, %v733, 0
      %773 = vmatpush.bf16.msra.mxu0 0
      %774 = vmatpush.bf16.msra.mxu0 0
      %775 = vmatpush.bf16.msra.mxu0 0
      %776 = vmatpush.bf16.msra.mxu0 %v344
      %777 = vmatpush.bf16.msra.mxu0 %v293
      %778 = vmatpush.bf16.msra.mxu0 %v292
      %779 = vmatpush.bf16.msra.mxu0 %v291
      %780 = vmatpush.bf16.msra.mxu0 %v290
      %781 = vmatmul.bf16.gmra.mxu0 %v735
      %v782 = vpop.f32.mrf.mxu0
      %v783 = vadd.f32 0.0, %v782
      %v784 = vpop.f32.mrf.mxu0
      %v785 = vadd.f32 0.0, %v784
      %786 = vmatmul.bf16.gmra.mxu0 %v738
      %v787 = vpop.f32.mrf.mxu0
      %v788 = vadd.f32 0.0, %v787
      %v789 = vpop.f32.mrf.mxu0
      %v790 = vadd.f32 0.0, %v789
      %791 = vmatmul.bf16.gmra.mxu0 %v741
      %v792 = vpop.f32.mrf.mxu0
      %v793 = vadd.f32 0.0, %v792
      %v794 = vpop.f32.mrf.mxu0
      %v795 = vadd.f32 0.0, %v794
      %796 = vmatmul.bf16.gmra.mxu0 %v744
      %v797 = vpop.f32.mrf.mxu0
      %v798 = vadd.f32 0.0, %v797
      %v799 = vpop.f32.mrf.mxu0
      %v800 = vadd.f32 0.0, %v799
      %801 = vmatmul.bf16.gmra.mxu0 %v747
      %v802 = vpop.f32.mrf.mxu0
      %v803 = vadd.f32 0.0, %v802
      %v804 = vpop.f32.mrf.mxu0
      %v805 = vadd.f32 0.0, %v804
      %806 = vmatmul.bf16.gmra.mxu0 %v750
      %v807 = vpop.f32.mrf.mxu0
      %v808 = vadd.f32 0.0, %v807
      %v809 = vpop.f32.mrf.mxu0
      %v810 = vadd.f32 0.0, %v809
      %811 = vmatmul.bf16.gmra.mxu0 %v753
      %v812 = vpop.f32.mrf.mxu0
      %v813 = vadd.f32 0.0, %v812
      %v814 = vpop.f32.mrf.mxu0
      %v815 = vadd.f32 0.0, %v814
      %816 = vmatmul.bf16.gmra.mxu0 %v756
      %v817 = vpop.f32.mrf.mxu0
      %v818 = vadd.f32 0.0, %v817
      %v819 = vpop.f32.mrf.mxu0
      %v820 = vadd.f32 0.0, %v819
      %821 = vmatmul.bf16.gmra.mxu0 %v759
      %v822 = vpop.f32.mrf.mxu0
      %v823 = vadd.f32 0.0, %v822
      %v824 = vpop.f32.mrf.mxu0
      %v825 = vadd.f32 0.0, %v824
      %826 = vmatmul.bf16.gmra.mxu0 %v762
      %v827 = vpop.f32.mrf.mxu0
      %v828 = vadd.f32 0.0, %v827
      %v829 = vpop.f32.mrf.mxu0
      %v830 = vadd.f32 0.0, %v829
      %831 = vmatmul.bf16.gmra.mxu0 %v765
      %v832 = vpop.f32.mrf.mxu0
      %v833 = vadd.f32 0.0, %v832
      %v834 = vpop.f32.mrf.mxu0
      %v835 = vadd.f32 0.0, %v834
      %836 = vmatmul.bf16.gmra.mxu0 %v768
      %v837 = vpop.f32.mrf.mxu0
      %v838 = vadd.f32 0.0, %v837
      %v839 = vpop.f32.mrf.mxu0
      %v840 = vadd.f32 0.0, %v839
      %841 = vmatmul.bf16.gmra.mxu0 %v771
      %v842 = vpop.f32.mrf.mxu0
      %v843 = vadd.f32 0.0, %v842
      %v844 = vpop.f32.mrf.mxu0
      %845 = vdwg.mxu0
      %v846 = vmax.f32 %v620, %v783
      %v847 = vmax.f32 %v621, %v785
      %v848 = vmax.f32 %v622, %v788
      %v849 = vmax.f32 %v623, %v790
      %v850 = vmax.f32 %v624, %v793
      %v851 = vmax.f32 %v625, %v795
      %v852 = vmax.f32 %v626, %v798
      %v853 = vmax.f32 %v627, %v800
      %v854 = vmax.f32 %v628, %v803
      %v855 = vmax.f32 %v629, %v805
      %v856 = vmax.f32 %v630, %v808
      %v857 = vmax.f32 %v631, %v810
      %v858 = vmax.f32 %v632, %v813
      %v859 = vmax.f32 %v633, %v815
      %v860 = vmax.f32 %v634, %v818
      %v861 = vmax.f32 %v635, %v820
      %v862 = vmax.f32 %v636, %v823
      %v863 = vmax.f32 %v637, %v825
      %v864 = vmax.f32 %v638, %v828
      %v865 = vmax.f32 %v639, %v830
      %v866 = vmax.f32 %v640, %v833
      %v867 = vmax.f32 %v641, %v835
      %v868 = vmax.f32 %v642, %v838
      %v869 = vmax.f32 %v643, %v840
      %v870 = vmax.f32 %v644, %v843
      %s871 = scalar_lea.vmem %s165, 300
      %v872 = vld [vmem:[%s871] sm:$0xf]
      %v873 = vld [vmem:[%s871 + $0x4] sm:$0xf]
      %v874 = vld [vmem:[%s871 + $0x8] sm:$0xf]
      %v875 = vld [vmem:[%s871 + $0xc] sm:$0xf]
      %v876 = vld [vmem:[%s871 + $0x10] sm:$0xf]
      %v877 = vld [vmem:[%s871 + $0x14] sm:$0xf]
      %v878 = vld [vmem:[%s871 + $0x18] sm:$0xf]
      %v879 = vld [vmem:[%s871 + $0x1c] sm:$0xf]
      %v880 = vld [vmem:[%s871 + $0x20] sm:$0xf]
      %v881 = vld [vmem:[%s871 + $0x24] sm:$0xf]
      %v882 = vld [vmem:[%s871 + $0x28] sm:$0xf]
      %v883 = vld [vmem:[%s871 + $0x2c] sm:$0xf]
      %v884 = vld [vmem:[%s871 + $0x30] sm:$0xf]
      %v885 = vld [vmem:[%s871 + $0x34] sm:$0xf]
      %v886 = vld [vmem:[%s871 + $0x38] sm:$0xf]
      %v887 = vld [vmem:[%s871 + $0x3c] sm:$0xf]
      %v888 = vld [vmem:[%s871 + $0x40] sm:$0xf]
      %v889 = vld [vmem:[%s871 + $0x44] sm:$0xf]
      %v890 = vld [vmem:[%s871 + $0x48] sm:$0xf]
      %v891 = vld [vmem:[%s871 + $0x4c] sm:$0xf]
      %v892 = vld [vmem:[%s871 + $0x50] sm:$0xf]
      %v893 = vld [vmem:[%s871 + $0x54] sm:$0xf]
      %v894 = vld [vmem:[%s871 + $0x58] sm:$0xf]
      %v895 = vld [vmem:[%s871 + $0x5c] sm:$0xf]
      %v896 = vld [vmem:[%s871 + $0x60] sm:$0x3]
      %v922 = vunpack.c.l.b16 %v872
      %v923 = vunpack.c.l.b16 %v873
      %v924 = vunpack.c.l.b16 %v874
      %v925 = vunpack.c.l.b16 %v875
      %v926 = vunpack.c.l.b16 %v876
      %v927 = vunpack.c.l.b16 %v877
      %v928 = vunpack.c.l.b16 %v878
      %v929 = vunpack.c.l.b16 %v879
      %v930 = vunpack.c.l.b16 %v880
      %v931 = vunpack.c.l.b16 %v881
      %v932 = vunpack.c.l.b16 %v882
      %v933 = vunpack.c.l.b16 %v883
      %v934 = vunpack.c.l.b16 %v884
      %v935 = vunpack.c.l.b16 %v885
      %v936 = vunpack.c.l.b16 %v886
      %v937 = vunpack.c.l.b16 %v887
      %v938 = vunpack.c.l.b16 %v888
      %v939 = vunpack.c.l.b16 %v889
      %v940 = vunpack.c.l.b16 %v890
      %v941 = vunpack.c.l.b16 %v891
      %v942 = vunpack.c.l.b16 %v892
      %v943 = vunpack.c.l.b16 %v893
      %v944 = vunpack.c.l.b16 %v894
      %v945 = vunpack.c.l.b16 %v895
      %v946 = vunpack.c.l.b16 %v896
      %v947 = vpack.c.b16 %v923, %v922
      %v948 = vpack.c.b16 %v925, %v924
      %v949 = vpack.c.b16 %v927, %v926
      %v950 = vpack.c.b16 %v929, %v928
      %v951 = vpack.c.b16 %v931, %v930
      %v952 = vpack.c.b16 %v933, %v932
      %v953 = vpack.c.b16 %v935, %v934
      %v954 = vpack.c.b16 %v937, %v936
      %v955 = vpack.c.b16 %v939, %v938
      %v956 = vpack.c.b16 %v941, %v940
      %v957 = vpack.c.b16 %v943, %v942
      %v958 = vpack.c.b16 %v945, %v944
      %v959 = vpack.c.b16 %v946, %v946
      %v961 = vsel %vm299, %v947, 0
      %v964 = vsel %vm299, %v948, 0
      %v967 = vsel %vm299, %v949, 0
      %v970 = vsel %vm299, %v950, 0
      %v973 = vsel %vm299, %v951, 0
      %v976 = vsel %vm299, %v952, 0
      %v979 = vsel %vm299, %v953, 0
      %v982 = vsel %vm299, %v954, 0
      %v985 = vsel %vm299, %v955, 0
      %v988 = vsel %vm299, %v956, 0
      %v991 = vsel %vm299, %v957, 0
      %v994 = vsel %vm299, %v958, 0
      %v997 = vsel %vm299, %v959, 0
      %999 = vmatpush.bf16.msra.mxu0 0
      %1000 = vmatpush.bf16.msra.mxu0 0
      %1001 = vmatpush.bf16.msra.mxu0 0
      %1002 = vmatpush.bf16.msra.mxu0 %v344
      %1003 = vmatpush.bf16.msra.mxu0 %v293
      %1004 = vmatpush.bf16.msra.mxu0 %v292
      %1005 = vmatpush.bf16.msra.mxu0 %v291
      %1006 = vmatpush.bf16.msra.mxu0 %v290
      %1007 = vmatmul.bf16.gmra.mxu0 %v961
      %v1008 = vpop.f32.mrf.mxu0
      %v1009 = vadd.f32 0.0, %v1008
      %v1010 = vpop.f32.mrf.mxu0
      %v1011 = vadd.f32 0.0, %v1010
      %1012 = vmatmul.bf16.gmra.mxu0 %v964
      %v1013 = vpop.f32.mrf.mxu0
      %v1014 = vadd.f32 0.0, %v1013
      %v1015 = vpop.f32.mrf.mxu0
      %v1016 = vadd.f32 0.0, %v1015
      %1017 = vmatmul.bf16.gmra.mxu0 %v967
      %v1018 = vpop.f32.mrf.mxu0
      %v1019 = vadd.f32 0.0, %v1018
      %v1020 = vpop.f32.mrf.mxu0
      %v1021 = vadd.f32 0.0, %v1020
      %1022 = vmatmul.bf16.gmra.mxu0 %v970
      %v1023 = vpop.f32.mrf.mxu0
      %v1024 = vadd.f32 0.0, %v1023
      %v1025 = vpop.f32.mrf.mxu0
      %v1026 = vadd.f32 0.0, %v1025
      %1027 = vmatmul.bf16.gmra.mxu0 %v973
      %v1028 = vpop.f32.mrf.mxu0
      %v1029 = vadd.f32 0.0, %v1028
      %v1030 = vpop.f32.mrf.mxu0
      %v1031 = vadd.f32 0.0, %v1030
      %1032 = vmatmul.bf16.gmra.mxu0 %v976
      %v1033 = vpop.f32.mrf.mxu0
      %v1034 = vadd.f32 0.0, %v1033
      %v1035 = vpop.f32.mrf.mxu0
      %v1036 = vadd.f32 0.0, %v1035
      %1037 = vmatmul.bf16.gmra.mxu0 %v979
      %v1038 = vpop.f32.mrf.mxu0
      %v1039 = vadd.f32 0.0, %v1038
      %v1040 = vpop.f32.mrf.mxu0
      %v1041 = vadd.f32 0.0, %v1040
      %1042 = vmatmul.bf16.gmra.mxu0 %v982
      %v1043 = vpop.f32.mrf.mxu0
      %v1044 = vadd.f32 0.0, %v1043
      %v1045 = vpop.f32.mrf.mxu0
      %v1046 = vadd.f32 0.0, %v1045
      %1047 = vmatmul.bf16.gmra.mxu0 %v985
      %v1048 = vpop.f32.mrf.mxu0
      %v1049 = vadd.f32 0.0, %v1048
      %v1050 = vpop.f32.mrf.mxu0
      %v1051 = vadd.f32 0.0, %v1050
      %1052 = vmatmul.bf16.gmra.mxu0 %v988
      %v1053 = vpop.f32.mrf.mxu0
      %v1054 = vadd.f32 0.0, %v1053
      %v1055 = vpop.f32.mrf.mxu0
      %v1056 = vadd.f32 0.0, %v1055
      %1057 = vmatmul.bf16.gmra.mxu0 %v991
      %v1058 = vpop.f32.mrf.mxu0
      %v1059 = vadd.f32 0.0, %v1058
      %v1060 = vpop.f32.mrf.mxu0
      %v1061 = vadd.f32 0.0, %v1060
      %1062 = vmatmul.bf16.gmra.mxu0 %v994
      %v1063 = vpop.f32.mrf.mxu0
      %v1064 = vadd.f32 0.0, %v1063
      %v1065 = vpop.f32.mrf.mxu0
      %v1066 = vadd.f32 0.0, %v1065
      %1067 = vmatmul.bf16.gmra.mxu0 %v997
      %v1068 = vpop.f32.mrf.mxu0
      %v1069 = vadd.f32 0.0, %v1068
      %v1070 = vpop.f32.mrf.mxu0
      %1071 = vdwg.mxu0
      %v1072 = vmax.f32 %v846, %v1009
      %v1073 = vmax.f32 %v847, %v1011
      %v1074 = vmax.f32 %v848, %v1014
      %v1075 = vmax.f32 %v849, %v1016
      %v1076 = vmax.f32 %v850, %v1019
      %v1077 = vmax.f32 %v851, %v1021
      %v1078 = vmax.f32 %v852, %v1024
      %v1079 = vmax.f32 %v853, %v1026
      %v1080 = vmax.f32 %v854, %v1029
      %v1081 = vmax.f32 %v855, %v1031
      %v1082 = vmax.f32 %v856, %v1034
      %v1083 = vmax.f32 %v857, %v1036
      %v1084 = vmax.f32 %v858, %v1039
      %v1085 = vmax.f32 %v859, %v1041
      %v1086 = vmax.f32 %v860, %v1044
      %v1087 = vmax.f32 %v861, %v1046
      %v1088 = vmax.f32 %v862, %v1049
      %v1089 = vmax.f32 %v863, %v1051
      %v1090 = vmax.f32 %v864, %v1054
      %v1091 = vmax.f32 %v865, %v1056
      %v1092 = vmax.f32 %v866, %v1059
      %v1093 = vmax.f32 %v867, %v1061
      %v1094 = vmax.f32 %v868, %v1064
      %v1095 = vmax.f32 %v869, %v1066
      %v1096 = vmax.f32 %v870, %v1069
      %v1097 = vld [vmem:[%s2] sm:$0x1]
      %v1099 = vperm.slane %v1097, 0
      %v1101 = vadd.f32 %v1072, %v1099
      %v1102 = vadd.f32 %v1073, %v1099
      %v1103 = vadd.f32 %v1074, %v1099
      %v1104 = vadd.f32 %v1075, %v1099
      %v1105 = vadd.f32 %v1076, %v1099
      %v1106 = vadd.f32 %v1077, %v1099
      %v1107 = vadd.f32 %v1078, %v1099
      %v1108 = vadd.f32 %v1079, %v1099
      %v1109 = vadd.f32 %v1080, %v1099
      %v1110 = vadd.f32 %v1081, %v1099
      %v1111 = vadd.f32 %v1082, %v1099
      %v1112 = vadd.f32 %v1083, %v1099
      %v1113 = vadd.f32 %v1084, %v1099
      %v1114 = vadd.f32 %v1085, %v1099
      %v1115 = vadd.f32 %v1086, %v1099
      %v1116 = vadd.f32 %v1087, %v1099
      %v1117 = vadd.f32 %v1088, %v1099
      %v1118 = vadd.f32 %v1089, %v1099
      %v1119 = vadd.f32 %v1090, %v1099
      %v1120 = vadd.f32 %v1091, %v1099
      %v1121 = vadd.f32 %v1092, %v1099
      %v1122 = vadd.f32 %v1093, %v1099
      %v1123 = vadd.f32 %v1094, %v1099
      %v1124 = vadd.f32 %v1095, %v1099
      %v1125 = vadd.f32 %v1096, %v1099
      %v1126 = vmax.f32 %v1101, 0.0
      %v1127 = vmax.f32 %v1102, 0.0
      %v1128 = vmax.f32 %v1103, 0.0
      %v1129 = vmax.f32 %v1104, 0.0
      %v1130 = vmax.f32 %v1105, 0.0
      %v1131 = vmax.f32 %v1106, 0.0
      %v1132 = vmax.f32 %v1107, 0.0
      %v1133 = vmax.f32 %v1108, 0.0
      %v1134 = vmax.f32 %v1109, 0.0
      %v1135 = vmax.f32 %v1110, 0.0
      %v1136 = vmax.f32 %v1111, 0.0
      %v1137 = vmax.f32 %v1112, 0.0
      %v1138 = vmax.f32 %v1113, 0.0
      %v1139 = vmax.f32 %v1114, 0.0
      %v1140 = vmax.f32 %v1115, 0.0
      %v1141 = vmax.f32 %v1116, 0.0
      %v1142 = vmax.f32 %v1117, 0.0
      %v1143 = vmax.f32 %v1118, 0.0
      %v1144 = vmax.f32 %v1119, 0.0
      %v1145 = vmax.f32 %v1120, 0.0
      %v1146 = vmax.f32 %v1121, 0.0
      %v1147 = vmax.f32 %v1122, 0.0
      %v1148 = vmax.f32 %v1123, 0.0
      %v1149 = vmax.f32 %v1124, 0.0
      %v1150 = vmax.f32 %v1125, 0.0
      %v1151 = vpack.c.bf16 %v1126, %v1126
      %v1152 = vpack.c.bf16 %v1127, %v1127
      %v1153 = vpack.c.bf16 %v1128, %v1128
      %v1154 = vpack.c.bf16 %v1129, %v1129
      %v1155 = vpack.c.bf16 %v1130, %v1130
      %v1156 = vpack.c.bf16 %v1131, %v1131
      %v1157 = vpack.c.bf16 %v1132, %v1132
      %v1158 = vpack.c.bf16 %v1133, %v1133
      %v1159 = vpack.c.bf16 %v1134, %v1134
      %v1160 = vpack.c.bf16 %v1135, %v1135
      %v1161 = vpack.c.bf16 %v1136, %v1136
      %v1162 = vpack.c.bf16 %v1137, %v1137
      %v1163 = vpack.c.bf16 %v1138, %v1138
      %v1164 = vpack.c.bf16 %v1139, %v1139
      %v1165 = vpack.c.bf16 %v1140, %v1140
      %v1166 = vpack.c.bf16 %v1141, %v1141
      %v1167 = vpack.c.bf16 %v1142, %v1142
      %v1168 = vpack.c.bf16 %v1143, %v1143
      %v1169 = vpack.c.bf16 %v1144, %v1144
      %v1170 = vpack.c.bf16 %v1145, %v1145
      %v1171 = vpack.c.bf16 %v1146, %v1146
      %v1172 = vpack.c.bf16 %v1147, %v1147
      %v1173 = vpack.c.bf16 %v1148, %v1148
      %v1174 = vpack.c.bf16 %v1149, %v1149
      %v1175 = vpack.c.bf16 %v1150, %v1150
      %vm1176 = vcmask 44032
      %1177 = vst.msk [vmem:[%s170] sm:$0xf] %vm1176, %v1151
      %1178 = vst.msk [vmem:[%s170 + $0x4] sm:$0xf] %vm1176, %v1152
      %1179 = vst.msk [vmem:[%s170 + $0x8] sm:$0xf] %vm1176, %v1153
      %1180 = vst.msk [vmem:[%s170 + $0xc] sm:$0xf] %vm1176, %v1154
      %1181 = vst.msk [vmem:[%s170 + $0x10] sm:$0xf] %vm1176, %v1155
      %1182 = vst.msk [vmem:[%s170 + $0x14] sm:$0xf] %vm1176, %v1156
      %1183 = vst.msk [vmem:[%s170 + $0x18] sm:$0xf] %vm1176, %v1157
      %1184 = vst.msk [vmem:[%s170 + $0x1c] sm:$0xf] %vm1176, %v1158
      %1185 = vst.msk [vmem:[%s170 + $0x20] sm:$0xf] %vm1176, %v1159
      %1186 = vst.msk [vmem:[%s170 + $0x24] sm:$0xf] %vm1176, %v1160
      %1187 = vst.msk [vmem:[%s170 + $0x28] sm:$0xf] %vm1176, %v1161
      %1188 = vst.msk [vmem:[%s170 + $0x2c] sm:$0xf] %vm1176, %v1162
      %1189 = vst.msk [vmem:[%s170 + $0x30] sm:$0xf] %vm1176, %v1163
      %1190 = vst.msk [vmem:[%s170 + $0x34] sm:$0xf] %vm1176, %v1164
      %1191 = vst.msk [vmem:[%s170 + $0x38] sm:$0xf] %vm1176, %v1165
      %1192 = vst.msk [vmem:[%s170 + $0x3c] sm:$0xf] %vm1176, %v1166
      %1193 = vst.msk [vmem:[%s170 + $0x40] sm:$0xf] %vm1176, %v1167
      %1194 = vst.msk [vmem:[%s170 + $0x44] sm:$0xf] %vm1176, %v1168
      %1195 = vst.msk [vmem:[%s170 + $0x48] sm:$0xf] %vm1176, %v1169
      %1196 = vst.msk [vmem:[%s170 + $0x4c] sm:$0xf] %vm1176, %v1170
      %1197 = vst.msk [vmem:[%s170 + $0x50] sm:$0xf] %vm1176, %v1171
      %1198 = vst.msk [vmem:[%s170 + $0x54] sm:$0xf] %vm1176, %v1172
      %1199 = vst.msk [vmem:[%s170 + $0x58] sm:$0xf] %vm1176, %v1173
      %1200 = vst.msk [vmem:[%s170 + $0x5c] sm:$0xf] %vm1176, %v1174
      %vm1201 = vcmask 41984
      %1202 = vst.msk [vmem:[%s170 + $0x60] sm:$0x3] %vm1201, %v1175
      %p1203 = scmp.lt.s32.totalorder %s14, 1
      %s1204 = scalar_select %p1203, %s14, 1
      %s1205 = smul.addr %s1204, 25
      %s1206 = smul.addr %s1205, 4
      %s1207 = scalar_lea.vmem %s3, %s1206
      // Predicated region
      $region33: #{simplenet_forward.3} parent=31 // pred_check
        %p1208 = pneg %p100
      $region34: #{simplenet_forward.3} parent=31 // pred_check_branch
        %1210 = sbr.rel (%p1208) target = $region36
      $region35: #{simplenet_forward.3} parent=31 // pred_region
        _
      $region36: #{simplenet_forward.3} parent=31 // pred_fallthru
        _
    $region32: #{simplenet_forward.3} parent=5 // pred_fallthru
      _
    %p1211 = scmp.le.s32.totalorder 2, %s9
    // Predicated region
    $region37: #{simplenet_forward.3} parent=5 // pred_check
      %p1212 = pneg %p1211
    $region38: #{simplenet_forward.3} parent=5 // pred_check_branch
      %1214 = sbr.rel (%p1212) target = $region40
    $region39: #{simplenet_forward.3} parent=5 // pred_region
      %s1215 = ssub.s32 %s9, 2
      // Predicated region
      $region41: #{simplenet_forward.3} parent=39 // pred_check
        %p1216 = pneg %p106
      $region42: #{simplenet_forward.3} parent=39 // pred_check_branch
        %1218 = sbr.rel (%p1216) target = $region44
      $region43: #{simplenet_forward.3} parent=39 // pred_region
        %p1219 = scmp.lt.s32.totalorder %s15, 1
        %s1220 = scalar_select %p1219, %s15, 1
        %s1221 = smul.addr %s1220, 25
        %s1222 = smul.addr %s1221, 4
        %s1223 = scalar_lea.vmem %s3, %s1222
      $region44: #{simplenet_forward.3} parent=39 // pred_fallthru
        _
    $region40: #{simplenet_forward.3} parent=5 // pred_fallthru
      _
  $region6: #{simplenet_forward.3} parent=0 // loop_footer
    %s13 = sadd.s32 1, %s9
  $region7: #{simplenet_forward.3} parent=0 // loop_footer_branch
    %8 = sbr.rel target = $region3
  $region8: #{simplenet_forward.3} parent=0 // loop_exit
    _

// kernel: simplenet_forward.5
$region0: #{simplenet_forward.5}
  #allocation0 [shape = 'u32[]', space=smem, size = 0x4, offset = 0x4, fixed_abs, tag = 'smem constant byte address 0x4 - core index']
  #allocation1 [shape = 'u32[72,128]{1,0:T(1,128)}', space=vmem, size = 0x9000, scoped, tag = 'internal scratch']
  %s0 = inlined_call_operand.vmem [shape: bf16[2,400], index: 0, kind: input, shape index: {}]
  %s1 = inlined_call_operand.vmem [shape: bf16[400,120], index: 1, kind: input, shape index: {}]
  %s2 = inlined_call_operand.vmem [shape: f32[1,120], index: 2, kind: input, shape index: {}]
  %s3 = inlined_call_operand.vmem [shape: bf16[120,84], index: 3, kind: input, shape index: {}]
  %s4 = inlined_call_operand.vmem [shape: f32[1,84], index: 4, kind: input, shape index: {}]
  %s5 = inlined_call_operand.vmem [shape: bf16[84,10], index: 5, kind: input, shape index: {}]
  %s6 = inlined_call_operand.vmem [shape: f32[1,10], index: 6, kind: input, shape index: {}]
  %s7 = inlined_call_operand.hbm [shape: f32[2,10], index: 7, kind: output, shape index: {}]
  %s8 = sld [smem:[#allocation0]]
  $region38: #{simplenet_forward.5} parent=0
    _
  %s10 = ssub.s32 1, %s8
  %s11 = scalar_select 0, %s10, %s8
  $region1: #{simplenet_forward.5} parent=0
    #allocation2 [shape = 'u8[1024]{0}', space=vmem, size = 0x400, scoped, tag = 'output window, operand 0, single buffered']
    #allocation3 [shape = 's32[1]{0}', space=sflag, size = 0x4, scoped, tag = 'scoped memory for simplenet_forward.5']
    %12 = vsyncpa [#allocation3], 0
    // Predicated region
    $region2: #{simplenet_forward.5} parent=1 // pred_check
      _
    $region3: #{simplenet_forward.5} parent=1 // pred_check_branch
      %14 = sbr.rel (0) target = $region5
    $region4: #{simplenet_forward.5} parent=1 // pred_region
      _
    $region5: #{simplenet_forward.5} parent=1 // pred_fallthru
      _
    // Predicated region
    $region6: #{simplenet_forward.5} parent=1 // pred_check
      _
    $region7: #{simplenet_forward.5} parent=1 // pred_check_branch
      %16 = sbr.rel (0) target = $region9
    $region8: #{simplenet_forward.5} parent=1 // pred_region
      _
    $region9: #{simplenet_forward.5} parent=1 // pred_fallthru
      _
    // Predicated region
    $region10: #{simplenet_forward.5} parent=1 // pred_check
      _
    $region11: #{simplenet_forward.5} parent=1 // pred_check_branch
      %18 = sbr.rel (0) target = $region13
    $region12: #{simplenet_forward.5} parent=1 // pred_region
      _
    $region13: #{simplenet_forward.5} parent=1 // pred_fallthru
      _
    // Predicated region
    $region14: #{simplenet_forward.5} parent=1 // pred_check
      _
    $region15: #{simplenet_forward.5} parent=1 // pred_check_branch
      %20 = sbr.rel (0) target = $region17
    $region16: #{simplenet_forward.5} parent=1 // pred_region
      _
    $region17: #{simplenet_forward.5} parent=1 // pred_fallthru
      _
    // Predicated region
    $region18: #{simplenet_forward.5} parent=1 // pred_check
      _
    $region19: #{simplenet_forward.5} parent=1 // pred_check_branch
      %22 = sbr.rel (0) target = $region21
    $region20: #{simplenet_forward.5} parent=1 // pred_region
      _
    $region21: #{simplenet_forward.5} parent=1 // pred_fallthru
      _
    // Predicated region
    $region22: #{simplenet_forward.5} parent=1 // pred_check
      _
    $region23: #{simplenet_forward.5} parent=1 // pred_check_branch
      %24 = sbr.rel (0) target = $region25
    $region24: #{simplenet_forward.5} parent=1 // pred_region
      _
    $region25: #{simplenet_forward.5} parent=1 // pred_fallthru
      _
    // Predicated region
    $region26: #{simplenet_forward.5} parent=1 // pred_check
      _
    $region27: #{simplenet_forward.5} parent=1 // pred_check_branch
      %26 = sbr.rel (0) target = $region29
    $region28: #{simplenet_forward.5} parent=1 // pred_region
      _
    $region29: #{simplenet_forward.5} parent=1 // pred_fallthru
      _
    %v28 = vld [vmem:[%s0] sm:$0xf]
    %v29 = vld [vmem:[%s1] sm:$0xf]
    %v30 = vld [vmem:[%s1 + $0x4] sm:$0xf]
    %v31 = vld [vmem:[%s1 + $0x8] sm:$0xf]
    %v32 = vld [vmem:[%s1 + $0xc] sm:$0xf]
    %v33 = vld [vmem:[%s1 + $0x10] sm:$0xf]
    %v34 = vld [vmem:[%s1 + $0x14] sm:$0xf]
    %v35 = vld [vmem:[%s1 + $0x18] sm:$0xf]
    %v36 = vld [vmem:[%s1 + $0x1c] sm:$0xf]
    %v37 = vld [vmem:[%s1 + $0x20] sm:$0xf]
    %v38 = vld [vmem:[%s1 + $0x24] sm:$0xf]
    %v39 = vld [vmem:[%s1 + $0x28] sm:$0xf]
    %v40 = vld [vmem:[%s1 + $0x2c] sm:$0xf]
    %v41 = vld [vmem:[%s1 + $0x30] sm:$0xf]
    %v42 = vld [vmem:[%s1 + $0x34] sm:$0xf]
    %v43 = vld [vmem:[%s1 + $0x38] sm:$0xf]
    %v44 = vld [vmem:[%s1 + $0x3c] sm:$0xf]
    %v45 = vld [vmem:[%s1 + $0x40] sm:$0xf]
    %v46 = vld [vmem:[%s1 + $0x44] sm:$0xf]
    %v47 = vld [vmem:[%s1 + $0x48] sm:$0xf]
    %v48 = vld [vmem:[%s1 + $0x4c] sm:$0xf]
    %v49 = vld [vmem:[%s1 + $0x50] sm:$0xf]
    %v50 = vld [vmem:[%s1 + $0x54] sm:$0xf]
    %v51 = vld [vmem:[%s1 + $0x58] sm:$0xf]
    %v52 = vld [vmem:[%s1 + $0x5c] sm:$0xf]
    %v53 = vld [vmem:[%s1 + $0x60] sm:$0xf]
    %v54 = vld [vmem:[%s1 + $0x64] sm:$0xf]
    %v55 = vld [vmem:[%s1 + $0x68] sm:$0xf]
    %v56 = vld [vmem:[%s1 + $0x6c] sm:$0xf]
    %v57 = vld [vmem:[%s1 + $0x70] sm:$0xf]
    %v58 = vld [vmem:[%s1 + $0x74] sm:$0xf]
    %v59 = vld [vmem:[%s1 + $0x78] sm:$0xf]
    %v60 = vld [vmem:[%s1 + $0x7c] sm:$0xf]
    %v61 = vld [vmem:[%s1 + $0x80] sm:$0xf]
    %v62 = vld [vmem:[%s1 + $0x84] sm:$0xf]
    %v63 = vld [vmem:[%s1 + $0x88] sm:$0xf]
    %v64 = vld [vmem:[%s1 + $0x8c] sm:$0xf]
    %v65 = vld [vmem:[%s1 + $0x90] sm:$0xf]
    %v66 = vld [vmem:[%s1 + $0x94] sm:$0xf]
    %v67 = vld [vmem:[%s1 + $0x98] sm:$0xf]
    %v68 = vld [vmem:[%s1 + $0x9c] sm:$0xf]
    %v69 = vld [vmem:[%s1 + $0xa0] sm:$0xf]
    %v70 = vld [vmem:[%s1 + $0xa4] sm:$0xf]
    %v71 = vld [vmem:[%s1 + $0xa8] sm:$0xf]
    %v72 = vld [vmem:[%s1 + $0xac] sm:$0xf]
    %v73 = vld [vmem:[%s1 + $0xb0] sm:$0xf]
    %v74 = vld [vmem:[%s1 + $0xb4] sm:$0xf]
    %v75 = vld [vmem:[%s1 + $0xb8] sm:$0xf]
    %v76 = vld [vmem:[%s1 + $0xbc] sm:$0xf]
    %v77 = vld [vmem:[%s1 + $0xc0] sm:$0xf]
    %v78 = vld [vmem:[%s1 + $0xc4] sm:$0xf]
    %v79 = vld [vmem:[%s2] sm:$0x1]
    %v81 = vperm.slane %v79, 0
    %84 = vst [vmem:[#allocation1] ss:$9 sm:$0xff] %v28
    %v85 = vld [vmem:[#allocation1] sm:$0xff]
    %v86 = vld [vmem:[#allocation1 + $0x9] sm:$0xff]
    %v87 = vld [vmem:[#allocation1 + $0x12] sm:$0xff]
    %v88 = vld [vmem:[#allocation1 + $0x1b] sm:$0xff]
    %v142 = vunpack.c.l.b16 %v29
    %v143 = vunpack.c.l.b16 %v30
    %v144 = vunpack.c.l.b16 %v31
    %v145 = vunpack.c.l.b16 %v32
    %v146 = vunpack.c.l.b16 %v33
    %v147 = vunpack.c.l.b16 %v34
    %v148 = vunpack.c.l.b16 %v35
    %v149 = vunpack.c.l.b16 %v36
    %v150 = vunpack.c.l.b16 %v37
    %v151 = vunpack.c.l.b16 %v38
    %v152 = vunpack.c.l.b16 %v39
    %v153 = vunpack.c.l.b16 %v40
    %v154 = vunpack.c.l.b16 %v41
    %v155 = vunpack.c.l.b16 %v42
    %v156 = vunpack.c.l.b16 %v43
    %v157 = vunpack.c.l.b16 %v44
    %v158 = vunpack.c.l.b16 %v45
    %v159 = vunpack.c.l.b16 %v46
    %v160 = vunpack.c.l.b16 %v47
    %v161 = vunpack.c.l.b16 %v48
    %v162 = vunpack.c.l.b16 %v49
    %v163 = vunpack.c.l.b16 %v50
    %v164 = vunpack.c.l.b16 %v51
    %v165 = vunpack.c.l.b16 %v52
    %v166 = vunpack.c.l.b16 %v53
    %v167 = vunpack.c.l.b16 %v54
    %v168 = vunpack.c.l.b16 %v55
    %v169 = vunpack.c.l.b16 %v56
    %v170 = vunpack.c.l.b16 %v57
    %v171 = vunpack.c.l.b16 %v58
    %v172 = vunpack.c.l.b16 %v59
    %v173 = vunpack.c.l.b16 %v60
    %v174 = vunpack.c.l.b16 %v61
    %v175 = vunpack.c.l.b16 %v62
    %v176 = vunpack.c.l.b16 %v63
    %v177 = vunpack.c.l.b16 %v64
    %v178 = vunpack.c.l.b16 %v65
    %v179 = vunpack.c.l.b16 %v66
    %v180 = vunpack.c.l.b16 %v67
    %v181 = vunpack.c.l.b16 %v68
    %v182 = vunpack.c.l.b16 %v69
    %v183 = vunpack.c.l.b16 %v70
    %v184 = vunpack.c.l.b16 %v71
    %v185 = vunpack.c.l.b16 %v72
    %v186 = vunpack.c.l.b16 %v73
    %v187 = vunpack.c.l.b16 %v74
    %v188 = vunpack.c.l.b16 %v75
    %v189 = vunpack.c.l.b16 %v76
    %v190 = vunpack.c.l.b16 %v77
    %v191 = vunpack.c.l.b16 %v78
    %v192 = vpack.c.b16 %v143, %v142
    %v193 = vpack.c.b16 %v145, %v144
    %v194 = vpack.c.b16 %v147, %v146
    %v195 = vpack.c.b16 %v149, %v148
    %v196 = vpack.c.b16 %v151, %v150
    %v197 = vpack.c.b16 %v153, %v152
    %v198 = vpack.c.b16 %v155, %v154
    %v199 = vpack.c.b16 %v157, %v156
    %v200 = vpack.c.b16 %v159, %v158
    %v201 = vpack.c.b16 %v161, %v160
    %v202 = vpack.c.b16 %v163, %v162
    %v203 = vpack.c.b16 %v165, %v164
    %v204 = vpack.c.b16 %v167, %v166
    %v205 = vpack.c.b16 %v169, %v168
    %v206 = vpack.c.b16 %v171, %v170
    %v207 = vpack.c.b16 %v173, %v172
    %v208 = vpack.c.b16 %v175, %v174
    %v209 = vpack.c.b16 %v177, %v176
    %v210 = vpack.c.b16 %v179, %v178
    %v211 = vpack.c.b16 %v181, %v180
    %v212 = vpack.c.b16 %v183, %v182
    %v213 = vpack.c.b16 %v185, %v184
    %v214 = vpack.c.b16 %v187, %v186
    %v215 = vpack.c.b16 %v189, %v188
    %v216 = vpack.c.b16 %v191, %v190
    %vm242 = vcmask 130048
    %v243 = vsel %vm242, %v88, 0
    %245 = vmatpush.bf16.msra.mxu0 %v199
    %246 = vmatpush.bf16.msra.mxu0 %v198
    %247 = vmatpush.bf16.msra.mxu0 %v197
    %248 = vmatpush.bf16.msra.mxu0 %v196
    %249 = vmatpush.bf16.msra.mxu0 %v195
    %250 = vmatpush.bf16.msra.mxu0 %v194
    %251 = vmatpush.bf16.msra.mxu0 %v193
    %252 = vmatpush.bf16.msra.mxu0 %v192
    %253 = vmatmul.bf16.gmra.mxu0 %v85
    %v254 = vpop.f32.mrf.mxu0
    %v255 = vadd.f32 %v81, %v254
    %v256 = vpop.f32.mrf.mxu0
    %257 = vdwg.mxu0
    %258 = vmatpush.bf16.msra.mxu0 %v207
    %259 = vmatpush.bf16.msra.mxu0 %v206
    %260 = vmatpush.bf16.msra.mxu0 %v205
    %261 = vmatpush.bf16.msra.mxu0 %v204
    %262 = vmatpush.bf16.msra.mxu0 %v203
    %263 = vmatpush.bf16.msra.mxu0 %v202
    %264 = vmatpush.bf16.msra.mxu0 %v201
    %265 = vmatpush.bf16.msra.mxu0 %v200
    %266 = vmatmul.bf16.gmra.mxu0 %v86
    %v267 = vpop.f32.mrf.mxu0
    %v268 = vadd.f32 %v255, %v267
    %v269 = vpop.f32.mrf.mxu0
    %270 = vdwg.mxu0
    %271 = vmatpush.bf16.msra.mxu0 %v215
    %272 = vmatpush.bf16.msra.mxu0 %v214
    %273 = vmatpush.bf16.msra.mxu0 %v213
    %274 = vmatpush.bf16.msra.mxu0 %v212
    %275 = vmatpush.bf16.msra.mxu0 %v211
    %276 = vmatpush.bf16.msra.mxu0 %v210
    %277 = vmatpush.bf16.msra.mxu0 %v209
    %278 = vmatpush.bf16.msra.mxu0 %v208
    %279 = vmatmul.bf16.gmra.mxu0 %v87
    %v280 = vpop.f32.mrf.mxu0
    %v281 = vadd.f32 %v268, %v280
    %v282 = vpop.f32.mrf.mxu0
    %283 = vdwg.mxu0
    %284 = vmatpush.bf16.msra.mxu0 0
    %285 = vmatpush.bf16.msra.mxu0 0
    %286 = vmatpush.bf16.msra.mxu0 0
    %287 = vmatpush.bf16.msra.mxu0 0
    %288 = vmatpush.bf16.msra.mxu0 0
    %289 = vmatpush.bf16.msra.mxu0 0
    %290 = vmatpush.bf16.msra.mxu0 0
    %291 = vmatpush.bf16.msra.mxu0 %v216
    %292 = vmatmul.bf16.gmra.mxu0 %v243
    %v293 = vpop.f32.mrf.mxu0
    %v294 = vadd.f32 %v281, %v293
    %v295 = vpop.f32.mrf.mxu0
    %296 = vdwg.mxu0
    %v297 = vmax.f32 %v294, 0.0
    %v298 = vpack.c.bf16 %v297, %v297
    %v299 = vld [vmem:[%s3] sm:$0xf]
    %v300 = vld [vmem:[%s3 + $0x4] sm:$0xf]
    %v301 = vld [vmem:[%s3 + $0x8] sm:$0xf]
    %v302 = vld [vmem:[%s3 + $0xc] sm:$0xf]
    %v303 = vld [vmem:[%s3 + $0x10] sm:$0xf]
    %v304 = vld [vmem:[%s3 + $0x14] sm:$0xf]
    %v305 = vld [vmem:[%s3 + $0x18] sm:$0xf]
    %v306 = vld [vmem:[%s3 + $0x1c] sm:$0xf]
    %v307 = vld [vmem:[%s3 + $0x20] sm:$0xf]
    %v308 = vld [vmem:[%s3 + $0x24] sm:$0xf]
    %v309 = vld [vmem:[%s3 + $0x28] sm:$0xf]
    %v310 = vld [vmem:[%s3 + $0x2c] sm:$0xf]
    %v311 = vld [vmem:[%s3 + $0x30] sm:$0xf]
    %v312 = vld [vmem:[%s3 + $0x34] sm:$0xf]
    %v313 = vld [vmem:[%s3 + $0x38] sm:$0xf]
    %v314 = vld [vmem:[%s4] sm:$0x1]
    %v316 = vperm.slane %v314, 0
    %v333 = vunpack.c.l.b16 %v299
    %v334 = vunpack.c.l.b16 %v300
    %v335 = vunpack.c.l.b16 %v301
    %v336 = vunpack.c.l.b16 %v302
    %v337 = vunpack.c.l.b16 %v303
    %v338 = vunpack.c.l.b16 %v304
    %v339 = vunpack.c.l.b16 %v305
    %v340 = vunpack.c.l.b16 %v306
    %v341 = vunpack.c.l.b16 %v307
    %v342 = vunpack.c.l.b16 %v308
    %v343 = vunpack.c.l.b16 %v309
    %v344 = vunpack.c.l.b16 %v310
    %v345 = vunpack.c.l.b16 %v311
    %v346 = vunpack.c.l.b16 %v312
    %v347 = vunpack.c.l.b16 %v313
    %v348 = vpack.c.b16 %v334, %v333
    %v349 = vpack.c.b16 %v336, %v335
    %v350 = vpack.c.b16 %v338, %v337
    %v351 = vpack.c.b16 %v340, %v339
    %v352 = vpack.c.b16 %v342, %v341
    %v353 = vpack.c.b16 %v344, %v343
    %v354 = vpack.c.b16 %v346, %v345
    %v355 = vpack.c.b16 %v347, %v347
    %vm363 = vcmask 982016
    %v365 = vsel %vm363, %v298, 0
    %vm367 = vcmask 1043456
    %v369 = vsel %vm367, %v355, 0
    %371 = vmatpush.bf16.msra.mxu0 %v369
    %372 = vmatpush.bf16.msra.mxu0 %v354
    %373 = vmatpush.bf16.msra.mxu0 %v353
    %374 = vmatpush.bf16.msra.mxu0 %v352
    %375 = vmatpush.bf16.msra.mxu0 %v351
    %376 = vmatpush.bf16.msra.mxu0 %v350
    %377 = vmatpush.bf16.msra.mxu0 %v349
    %378 = vmatpush.bf16.msra.mxu0 %v348
    %379 = vmatmul.bf16.gmra.mxu0 %v365
    %v380 = vpop.f32.mrf.mxu0
    %v381 = vadd.f32 %v316, %v380
    %v382 = vpop.f32.mrf.mxu0
    %383 = vdwg.mxu0
    %v384 = vmax.f32 %v381, 0.0
    %v385 = vpack.c.bf16 %v384, %v384
    %v386 = vld [vmem:[%s5] sm:$0xf]
    %v387 = vld [vmem:[%s5 + $0x4] sm:$0xf]
    %v388 = vld [vmem:[%s5 + $0x8] sm:$0xf]
    %v389 = vld [vmem:[%s5 + $0xc] sm:$0xf]
    %v390 = vld [vmem:[%s5 + $0x10] sm:$0xf]
    %v391 = vld [vmem:[%s5 + $0x14] sm:$0xf]
    %v392 = vld [vmem:[%s5 + $0x18] sm:$0xf]
    %v393 = vld [vmem:[%s5 + $0x1c] sm:$0xf]
    %v394 = vld [vmem:[%s5 + $0x20] sm:$0xf]
    %v395 = vld [vmem:[%s5 + $0x24] sm:$0xf]
    %v396 = vld [vmem:[%s5 + $0x28] sm:$0x3]
    %v397 = vld [vmem:[%s6] sm:$0x1]
    %v399 = vperm.slane %v397, 0
    %v412 = vunpack.c.l.b16 %v386
    %v413 = vunpack.c.l.b16 %v387
    %v414 = vunpack.c.l.b16 %v388
    %v415 = vunpack.c.l.b16 %v389
    %v416 = vunpack.c.l.b16 %v390
    %v417 = vunpack.c.l.b16 %v391
    %v418 = vunpack.c.l.b16 %v392
    %v419 = vunpack.c.l.b16 %v393
    %v420 = vunpack.c.l.b16 %v394
    %v421 = vunpack.c.l.b16 %v395
    %v422 = vunpack.c.l.b16 %v396
    %v423 = vpack.c.b16 %v413, %v412
    %v424 = vpack.c.b16 %v415, %v414
    %v425 = vpack.c.b16 %v417, %v416
    %v426 = vpack.c.b16 %v419, %v418
    %v427 = vpack.c.b16 %v421, %v420
    %v428 = vpack.c.b16 %v422, %v422
    %vm434 = vcmask 687104
    %v436 = vsel %vm434, %v385, 0
    %vm438 = vcmask 1041408
    %v440 = vsel %vm438, %v428, 0
    %442 = vmatpush.bf16.msra.mxu0 0
    %443 = vmatpush.bf16.msra.mxu0 0
    %444 = vmatpush.bf16.msra.mxu0 %v440
    %445 = vmatpush.bf16.msra.mxu0 %v427
    %446 = vmatpush.bf16.msra.mxu0 %v426
    %447 = vmatpush.bf16.msra.mxu0 %v425
    %448 = vmatpush.bf16.msra.mxu0 %v424
    %449 = vmatpush.bf16.msra.mxu0 %v423
    %450 = vmatmul.bf16.gmra.mxu0 %v436
    %v451 = vpop.f32.mrf.mxu0
    %v452 = vadd.f32 %v399, %v451
    %v453 = vpop.f32.mrf.mxu0
    %454 = vdwg.mxu0
    %vm455 = vcmask 74752
    %456 = vst.msk [vmem:[#allocation2] sm:$0x3] %vm455, %v452
    // Predicated region
    $region30: #{simplenet_forward.5} parent=1 // pred_check
      _
    $region31: #{simplenet_forward.5} parent=1 // pred_check_branch
      %458 = sbr.rel (0) target = $region33
    $region32: #{simplenet_forward.5} parent=1 // pred_region
      %460 = vsyncadd [#allocation3], 0
      %s462 = sshll.u32 [#allocation2], 4
      %s463 = int_to_ptr.vmem [resolvable:$true] %s462
      %s464 = sshll.u32 %s7, 4
      %s465 = int_to_ptr.hbm [resolvable:$true] %s464
      %467 = dma.vmem_to_hbm [thread:$0]  %s463, 32, %s465, [#allocation3]
    $region33: #{simplenet_forward.5} parent=1 // pred_fallthru
      _
    // Predicated region
    $region34: #{simplenet_forward.5} parent=1 // pred_check
      _
    $region35: #{simplenet_forward.5} parent=1 // pred_check_branch
      %469 = sbr.rel (0) target = $region37
    $region36: #{simplenet_forward.5} parent=1 // pred_region
      %471 = dma.done [#allocation3], 32
    $region37: #{simplenet_forward.5} parent=1 // pred_fallthru
      _
    %472 = vsyncpa [#allocation3], 1

// kernel: simplenet_forward.4
$region0: #{simplenet_forward.4}
  #allocation0 [shape = 'u32[]', space=smem, size = 0x4, offset = 0x4, fixed_abs, tag = 'smem constant byte address 0x4 - core index']
  #allocation1 [shape = 'u32[72,128]{1,0:T(1,128)}', space=vmem, size = 0x9000, scoped, tag = 'internal scratch']
  %s0 = inlined_call_operand.vmem [shape: bf16[2,4,25,150], index: 0, kind: input, shape index: {}]
  %s1 = inlined_call_operand.vmem [shape: bf16[150,16], index: 1, kind: input, shape index: {}]
  %s2 = inlined_call_operand.vmem [shape: f32[1,16], index: 2, kind: input, shape index: {}]
  %s3 = inlined_call_operand.vmem [shape: bf16[2,25,16], index: 3, kind: output, shape index: {}]
  %s4 = sld [smem:[#allocation0]]
  $region45: #{simplenet_forward.4} parent=0
    _
  %s6 = ssub.s32 1, %s4
  %s7 = scalar_select 0, %s6, %s4
  loop: start=0, step=1, limit=4
  $region2: #{simplenet_forward.4} parent=0 // loop_pre_header
    _
  $region3: #{simplenet_forward.4} parent=0 // loop_header
    %s9 = sphi 0, %s13
    %p10 = scmp.ge.s32.totalorder %s9, 4
    %s19 = sphi 0, %s21
    %s22 = sphi 0, %s19
    %s23 = sphi 0, %s22
    %s39 = sphi 0, %s23
    %s43 = sphi 0, %s43
    %s45 = sphi 0, %s43
    %s46 = sphi 0, %s45
    %s60 = sphi 0, %s46
    %s64 = sphi 0, %s64
    %s66 = sphi 0, %s64
    %s67 = sphi 0, %s66
    %s81 = sphi 0, %s67
    %s87 = sphi 0, %s89
    %s90 = sphi 0, %s87
    %s91 = sphi 0, %s90
    %s107 = sphi 0, %s91
  $region4: #{simplenet_forward.4} parent=0 // loop_header_branch
    %12 = sbr.rel (%p10) target = $region8
  $region5: #{simplenet_forward.4} parent=0 // loop_body
    %s14 = ssub.s32 %s9, 1
    %s15 = ssub.s32 %s9, 2
    %s16 = sadd.s32 %s9, 1
    %s17 = ssub.s32 %s9, %s16
    %p18 = scmp.eq.s32.totalorder %s17, 0
    %s20 = sadd.s32 %s19, 1
    %s21 = scalar_select %p18, %s19, %s20
    %p24 = pneg %p18
    %p25 = scmp.eq.s32.totalorder %s9, 1
    %p26 = por %p24, %p25
    %p27 = scmp.ne.s32.totalorder %s19, %s22
    %p28 = scmp.eq.s32.totalorder %s9, 0
    %p29 = por %p27, %p28
    %p30 = scmp.ne.s32.totalorder %s19, %s22
    %p31 = scmp.eq.s32.totalorder %s14, 1
    %p32 = por %p30, %p31
    %p33 = scmp.ne.s32.totalorder %s22, %s23
    %p34 = scmp.eq.s32.totalorder %s14, 0
    %p35 = por %p33, %p34
    %p36 = scmp.ne.s32.totalorder %s22, %s23
    %p37 = scmp.eq.s32.totalorder %s15, 1
    %p38 = por %p36, %p37
    %p40 = scmp.ne.s32.totalorder %s23, %s39
    %p41 = scmp.eq.s32.totalorder %s15, 0
    %p42 = por %p40, %p41
    %s44 = sadd.s32 %s43, 1
    %p47 = scmp.eq.s32.totalorder %s9, 1
    %p48 = scmp.ne.s32.totalorder %s43, %s45
    %p49 = scmp.eq.s32.totalorder %s9, 0
    %p50 = por %p48, %p49
    %p51 = scmp.ne.s32.totalorder %s43, %s45
    %p52 = scmp.eq.s32.totalorder %s14, 1
    %p53 = por %p51, %p52
    %p54 = scmp.ne.s32.totalorder %s45, %s46
    %p55 = scmp.eq.s32.totalorder %s14, 0
    %p56 = por %p54, %p55
    %p57 = scmp.ne.s32.totalorder %s45, %s46
    %p58 = scmp.eq.s32.totalorder %s15, 1
    %p59 = por %p57, %p58
    %p61 = scmp.ne.s32.totalorder %s46, %s60
    %p62 = scmp.eq.s32.totalorder %s15, 0
    %p63 = por %p61, %p62
    %s65 = sadd.s32 %s64, 1
    %p68 = scmp.eq.s32.totalorder %s9, 1
    %p69 = scmp.ne.s32.totalorder %s64, %s66
    %p70 = scmp.eq.s32.totalorder %s9, 0
    %p71 = por %p69, %p70
    %p72 = scmp.ne.s32.totalorder %s64, %s66
    %p73 = scmp.eq.s32.totalorder %s14, 1
    %p74 = por %p72, %p73
    %p75 = scmp.ne.s32.totalorder %s66, %s67
    %p76 = scmp.eq.s32.totalorder %s14, 0
    %p77 = por %p75, %p76
    %p78 = scmp.ne.s32.totalorder %s66, %s67
    %p79 = scmp.eq.s32.totalorder %s15, 1
    %p80 = por %p78, %p79
    %p82 = scmp.ne.s32.totalorder %s67, %s81
    %p83 = scmp.eq.s32.totalorder %s15, 0
    %p84 = por %p82, %p83
    %s85 = ssub.s32 %s9, %s16
    %p86 = scmp.eq.s32.totalorder %s85, 0
    %s88 = sadd.s32 %s87, 1
    %s89 = scalar_select %p86, %s87, %s88
    %p92 = pneg %p86
    %p93 = scmp.eq.s32.totalorder %s9, 1
    %p94 = por %p92, %p93
    %p95 = scmp.ne.s32.totalorder %s87, %s90
    %p96 = scmp.eq.s32.totalorder %s9, 0
    %p97 = por %p95, %p96
    %p98 = scmp.ne.s32.totalorder %s87, %s90
    %p99 = scmp.eq.s32.totalorder %s14, 1
    %p100 = por %p98, %p99
    %p101 = scmp.ne.s32.totalorder %s90, %s91
    %p102 = scmp.eq.s32.totalorder %s14, 0
    %p103 = por %p101, %p102
    %p104 = scmp.ne.s32.totalorder %s90, %s91
    %p105 = scmp.eq.s32.totalorder %s15, 1
    %p106 = por %p104, %p105
    %p108 = scmp.ne.s32.totalorder %s91, %s107
    %p109 = scmp.eq.s32.totalorder %s15, 0
    %p110 = por %p108, %p109
    %p111 = scmp.le.s32.totalorder 1, %s9
    %p112 = scmp.lt.s32.totalorder %s9, 3
    %p113 = pnand %p111, %p112
    %p114 = pneg %p113
    // Predicated region
    $region9: #{simplenet_forward.4} parent=5 // pred_check
      _
    $region10: #{simplenet_forward.4} parent=5 // pred_check_branch
      %116 = sbr.rel (%p113) target = $region12
    $region11: #{simplenet_forward.4} parent=5 // pred_region
      %s117 = ssub.s32 %s9, 1
      // Predicated region
      $region13: #{simplenet_forward.4} parent=11 // pred_check
        %p118 = pneg %p56
      $region14: #{simplenet_forward.4} parent=11 // pred_check_branch
        %120 = sbr.rel (%p118) target = $region16
      $region15: #{simplenet_forward.4} parent=11 // pred_region
        _
      $region16: #{simplenet_forward.4} parent=11 // pred_fallthru
        _
      // Predicated region
      $region17: #{simplenet_forward.4} parent=11 // pred_check
        %p121 = pneg %p77
      $region18: #{simplenet_forward.4} parent=11 // pred_check_branch
        %123 = sbr.rel (%p121) target = $region20
      $region19: #{simplenet_forward.4} parent=11 // pred_region
        _
      $region20: #{simplenet_forward.4} parent=11 // pred_fallthru
        _
    $region12: #{simplenet_forward.4} parent=5 // pred_fallthru
      _
    %p124 = scmp.lt.s32.totalorder %s9, 2
    // Predicated region
    $region21: #{simplenet_forward.4} parent=5 // pred_check
      %p125 = pneg %p124
    $region22: #{simplenet_forward.4} parent=5 // pred_check_branch
      %127 = sbr.rel (%p125) target = $region24
    $region23: #{simplenet_forward.4} parent=5 // pred_region
      // Predicated region
      $region25: #{simplenet_forward.4} parent=23 // pred_check
        %p128 = pneg %p29
      $region26: #{simplenet_forward.4} parent=23 // pred_check_branch
        %130 = sbr.rel (%p128) target = $region28
      $region27: #{simplenet_forward.4} parent=23 // pred_region
        %p131 = scmp.lt.s32.totalorder %s9, 1
        %s132 = scalar_select %p131, %s9, 1
        %s133 = smul.addr %s132, 32
        %s134 = smul.addr %s133, 4
        %s135 = scalar_lea.vmem %s0, %s134
      $region28: #{simplenet_forward.4} parent=23 // pred_fallthru
        _
    $region24: #{simplenet_forward.4} parent=5 // pred_fallthru
      _
    %p136 = scmp.le.s32.totalorder 1, %s9
    %p137 = scmp.lt.s32.totalorder %s9, 3
    %p138 = pnand %p136, %p137
    %p139 = pneg %p138
    // Predicated region
    $region29: #{simplenet_forward.4} parent=5 // pred_check
      _
    $region30: #{simplenet_forward.4} parent=5 // pred_check_branch
      %141 = sbr.rel (%p138) target = $region32
    $region31: #{simplenet_forward.4} parent=5 // pred_region
      %s142 = ssub.s32 %s9, 1
      %p143 = scmp.lt.s32.totalorder %s14, 1
      %s144 = scalar_select %p143, %s14, 1
      %s145 = smul.addr %s144, 32
      %s146 = smul.addr %s145, 4
      %s147 = scalar_lea.vmem %s0, %s146
      %p148 = pneg %p35
      %p149 = pneg %p32
      %p150 = pneg %p56
      %p151 = pneg %p53
      %p152 = pneg %p77
      %p153 = pneg %p74
      %p154 = pneg %p103
      %p155 = pneg %p100
      %p156 = scmp.lt.s32.totalorder %s14, 1
      %s157 = scalar_select %p156, %s14, 1
      %s158 = smul.addr %s157, 4
      %s159 = smul.addr %s158, 4
      %s160 = scalar_lea.vmem %s3, %s159
      %p161 = scmp.lt.s32.totalorder %s14, 1
      %s162 = scalar_select %p161, %s14, 1
      %s163 = smul.addr %s162, 32
      %s164 = smul.addr %s163, 4
      %s165 = scalar_lea.vmem %s0, %s164
      %p166 = scmp.lt.s32.totalorder %s14, 1
      %s167 = scalar_select %p166, %s14, 1
      %s168 = smul.addr %s167, 4
      %s169 = smul.addr %s168, 4
      %s170 = scalar_lea.vmem %s3, %s169
      %v172 = vld [vmem:[%s1] sm:$0xf]
      %v173 = vld [vmem:[%s1 + $0x4] sm:$0xf]
      %v174 = vld [vmem:[%s1 + $0x8] sm:$0xf]
      %v175 = vld [vmem:[%s1 + $0xc] sm:$0xf]
      %v176 = vld [vmem:[%s1 + $0x10] sm:$0xf]
      %v177 = vld [vmem:[%s1 + $0x14] sm:$0xf]
      %v178 = vld [vmem:[%s1 + $0x18] sm:$0xf]
      %v179 = vld [vmem:[%s1 + $0x1c] sm:$0xf]
      %v180 = vld [vmem:[%s1 + $0x20] sm:$0xf]
      %v181 = vld [vmem:[%s1 + $0x24] sm:$0xf]
      %v182 = vld [vmem:[%s1 + $0x28] sm:$0xf]
      %v183 = vld [vmem:[%s1 + $0x2c] sm:$0xf]
      %v184 = vld [vmem:[%s1 + $0x30] sm:$0xf]
      %v185 = vld [vmem:[%s1 + $0x34] sm:$0xf]
      %v186 = vld [vmem:[%s1 + $0x38] sm:$0xf]
      %v187 = vld [vmem:[%s1 + $0x3c] sm:$0xf]
      %v188 = vld [vmem:[%s1 + $0x40] sm:$0xf]
      %v189 = vld [vmem:[%s1 + $0x44] sm:$0xf]
      %v190 = vld [vmem:[%s1 + $0x48] sm:$0x7]
      %v191 = vld [vmem:[%s165] sm:$0xff]
      %v192 = vld [vmem:[%s165 + $0x8] sm:$0xff]
      %v193 = vld [vmem:[%s165 + $0x10] sm:$0xff]
      %v194 = vld [vmem:[%s165 + $0x18] sm:$0x11]
      %v199 = vunpack.c.l.b16 %v191
      %v200 = vunpack.c.h.b16 %v191
      %v201 = vunpack.c.l.b16 %v192
      %v202 = vunpack.c.h.b16 %v192
      %v203 = vunpack.c.l.b16 %v193
      %v204 = vunpack.c.h.b16 %v193
      %v205 = vunpack.c.l.b16 %v194
      %v206 = vunpack.c.h.b16 %v194
      %v207 = vpack.c.b16 %v201, %v199
      %v208 = vpack.c.b16 %v202, %v200
      %v209 = vpack.c.b16 %v205, %v203
      %v210 = vpack.c.b16 %v206, %v204
      %v232 = vunpack.c.l.b16 %v172
      %v233 = vunpack.c.l.b16 %v173
      %v234 = vunpack.c.l.b16 %v174
      %v235 = vunpack.c.l.b16 %v175
      %v236 = vunpack.c.l.b16 %v176
      %v237 = vunpack.c.l.b16 %v177
      %v238 = vunpack.c.l.b16 %v178
      %v239 = vunpack.c.l.b16 %v179
      %v240 = vunpack.c.l.b16 %v180
      %v241 = vunpack.c.l.b16 %v181
      %v242 = vunpack.c.l.b16 %v182
      %v243 = vunpack.c.l.b16 %v183
      %v244 = vunpack.c.l.b16 %v184
      %v245 = vunpack.c.l.b16 %v185
      %v246 = vunpack.c.l.b16 %v186
      %v247 = vunpack.c.l.b16 %v187
      %v248 = vunpack.c.l.b16 %v188
      %v249 = vunpack.c.l.b16 %v189
      %v250 = vunpack.c.l.b16 %v190
      %v251 = vpack.c.b16 %v233, %v232
      %v252 = vpack.c.b16 %v235, %v234
      %v253 = vpack.c.b16 %v237, %v236
      %v254 = vpack.c.b16 %v239, %v238
      %v255 = vpack.c.b16 %v241, %v240
      %v256 = vpack.c.b16 %v243, %v242
      %v257 = vpack.c.b16 %v245, %v244
      %v258 = vpack.c.b16 %v247, %v246
      %v259 = vpack.c.b16 %v249, %v248
      %v260 = vpack.c.b16 %v250, %v250
      %vm270 = vcmask 179200
      %v272 = vsel %vm270, %v208, 0
      %v275 = vsel %vm270, %v210, 0
      %vm277 = vcmask 1042432
      %v279 = vsel %vm277, %v260, 0
      %281 = vmatpush.bf16.msra.mxu0 %v258
      %282 = vmatpush.bf16.msra.mxu0 %v257
      %283 = vmatpush.bf16.msra.mxu0 %v256
      %284 = vmatpush.bf16.msra.mxu0 %v255
      %285 = vmatpush.bf16.msra.mxu0 %v254
      %286 = vmatpush.bf16.msra.mxu0 %v253
      %287 = vmatpush.bf16.msra.mxu0 %v252
      %288 = vmatpush.bf16.msra.mxu0 %v251
      %289 = vmatmul.bf16.gmra.mxu0 %v207
      %v290 = vpop.f32.mrf.mxu0
      %v291 = vadd.f32 0.0, %v290
      %v292 = vpop.f32.mrf.mxu0
      %v293 = vadd.f32 0.0, %v292
      %294 = vmatmul.bf16.gmra.mxu0 %v209
      %v295 = vpop.f32.mrf.mxu0
      %v296 = vadd.f32 0.0, %v295
      %v297 = vpop.f32.mrf.mxu0
      %v298 = vadd.f32 0.0, %v297
      %299 = vdwg.mxu0
      %300 = vmatpush.bf16.msra.mxu0 0
      %301 = vmatpush.bf16.msra.mxu0 0
      %302 = vmatpush.bf16.msra.mxu0 0
      %303 = vmatpush.bf16.msra.mxu0 0
      %304 = vmatpush.bf16.msra.mxu0 0
      %305 = vmatpush.bf16.msra.mxu0 0
      %306 = vmatpush.bf16.msra.mxu0 %v279
      %307 = vmatpush.bf16.msra.mxu0 %v259
      %308 = vmatmul.bf16.gmra.mxu0 %v272
      %v309 = vpop.f32.mrf.mxu0
      %v310 = vadd.f32 %v291, %v309
      %v311 = vpop.f32.mrf.mxu0
      %v312 = vadd.f32 %v293, %v311
      %313 = vmatmul.bf16.gmra.mxu0 %v275
      %v314 = vpop.f32.mrf.mxu0
      %v315 = vadd.f32 %v296, %v314
      %v316 = vpop.f32.mrf.mxu0
      %v317 = vadd.f32 %v298, %v316
      %318 = vdwg.mxu0
      %s319 = scalar_lea.vmem %s165, 32
      %v320 = vld [vmem:[%s319] sm:$0xff]
      %v321 = vld [vmem:[%s319 + $0x8] sm:$0xff]
      %v322 = vld [vmem:[%s319 + $0x10] sm:$0xff]
      %v323 = vld [vmem:[%s319 + $0x18] sm:$0x11]
      %v328 = vunpack.c.l.b16 %v320
      %v329 = vunpack.c.h.b16 %v320
      %v330 = vunpack.c.l.b16 %v321
      %v331 = vunpack.c.h.b16 %v321
      %v332 = vunpack.c.l.b16 %v322
      %v333 = vunpack.c.h.b16 %v322
      %v334 = vunpack.c.l.b16 %v323
      %v335 = vunpack.c.h.b16 %v323
      %v336 = vpack.c.b16 %v330, %v328
      %v337 = vpack.c.b16 %v331, %v329
      %v338 = vpack.c.b16 %v334, %v332
      %v339 = vpack.c.b16 %v335, %v333
      %v343 = vsel %vm270, %v337, 0
      %v346 = vsel %vm270, %v339, 0
      %348 = vmatpush.bf16.msra.mxu0 %v258
      %349 = vmatpush.bf16.msra.mxu0 %v257
      %350 = vmatpush.bf16.msra.mxu0 %v256
      %351 = vmatpush.bf16.msra.mxu0 %v255
      %352 = vmatpush.bf16.msra.mxu0 %v254
      %353 = vmatpush.bf16.msra.mxu0 %v253
      %354 = vmatpush.bf16.msra.mxu0 %v252
      %355 = vmatpush.bf16.msra.mxu0 %v251
      %356 = vmatmul.bf16.gmra.mxu0 %v336
      %v357 = vpop.f32.mrf.mxu0
      %v358 = vadd.f32 0.0, %v357
      %v359 = vpop.f32.mrf.mxu0
      %v360 = vadd.f32 0.0, %v359
      %361 = vmatmul.bf16.gmra.mxu0 %v338
      %v362 = vpop.f32.mrf.mxu0
      %v363 = vadd.f32 0.0, %v362
      %v364 = vpop.f32.mrf.mxu0
      %v365 = vadd.f32 0.0, %v364
      %366 = vdwg.mxu0
      %367 = vmatpush.bf16.msra.mxu0 0
      %368 = vmatpush.bf16.msra.mxu0 0
      %369 = vmatpush.bf16.msra.mxu0 0
      %370 = vmatpush.bf16.msra.mxu0 0
      %371 = vmatpush.bf16.msra.mxu0 0
      %372 = vmatpush.bf16.msra.mxu0 0
      %373 = vmatpush.bf16.msra.mxu0 %v279
      %374 = vmatpush.bf16.msra.mxu0 %v259
      %375 = vmatmul.bf16.gmra.mxu0 %v343
      %v376 = vpop.f32.mrf.mxu0
      %v377 = vadd.f32 %v358, %v376
      %v378 = vpop.f32.mrf.mxu0
      %v379 = vadd.f32 %v360, %v378
      %380 = vmatmul.bf16.gmra.mxu0 %v346
      %v381 = vpop.f32.mrf.mxu0
      %v382 = vadd.f32 %v363, %v381
      %v383 = vpop.f32.mrf.mxu0
      %v384 = vadd.f32 %v365, %v383
      %385 = vdwg.mxu0
      %v386 = vmax.f32 %v310, %v377
      %v387 = vmax.f32 %v312, %v379
      %v388 = vmax.f32 %v315, %v382
      %v389 = vmax.f32 %v317, %v384
      %s390 = scalar_lea.vmem %s165, 64
      %v391 = vld [vmem:[%s390] sm:$0xff]
      %v392 = vld [vmem:[%s390 + $0x8] sm:$0xff]
      %v393 = vld [vmem:[%s390 + $0x10] sm:$0xff]
      %v394 = vld [vmem:[%s390 + $0x18] sm:$0x11]
      %v399 = vunpack.c.l.b16 %v391
      %v400 = vunpack.c.h.b16 %v391
      %v401 = vunpack.c.l.b16 %v392
      %v402 = vunpack.c.h.b16 %v392
      %v403 = vunpack.c.l.b16 %v393
      %v404 = vunpack.c.h.b16 %v393
      %v405 = vunpack.c.l.b16 %v394
      %v406 = vunpack.c.h.b16 %v394
      %v407 = vpack.c.b16 %v401, %v399
      %v408 = vpack.c.b16 %v402, %v400
      %v409 = vpack.c.b16 %v405, %v403
      %v410 = vpack.c.b16 %v406, %v404
      %v414 = vsel %vm270, %v408, 0
      %v417 = vsel %vm270, %v410, 0
      %419 = vmatpush.bf16.msra.mxu0 %v258
      %420 = vmatpush.bf16.msra.mxu0 %v257
      %421 = vmatpush.bf16.msra.mxu0 %v256
      %422 = vmatpush.bf16.msra.mxu0 %v255
      %423 = vmatpush.bf16.msra.mxu0 %v254
      %424 = vmatpush.bf16.msra.mxu0 %v253
      %425 = vmatpush.bf16.msra.mxu0 %v252
      %426 = vmatpush.bf16.msra.mxu0 %v251
      %427 = vmatmul.bf16.gmra.mxu0 %v407
      %v428 = vpop.f32.mrf.mxu0
      %v429 = vadd.f32 0.0, %v428
      %v430 = vpop.f32.mrf.mxu0
      %v431 = vadd.f32 0.0, %v430
      %432 = vmatmul.bf16.gmra.mxu0 %v409
      %v433 = vpop.f32.mrf.mxu0
      %v434 = vadd.f32 0.0, %v433
      %v435 = vpop.f32.mrf.mxu0
      %v436 = vadd.f32 0.0, %v435
      %437 = vdwg.mxu0
      %438 = vmatpush.bf16.msra.mxu0 0
      %439 = vmatpush.bf16.msra.mxu0 0
      %440 = vmatpush.bf16.msra.mxu0 0
      %441 = vmatpush.bf16.msra.mxu0 0
      %442 = vmatpush.bf16.msra.mxu0 0
      %443 = vmatpush.bf16.msra.mxu0 0
      %444 = vmatpush.bf16.msra.mxu0 %v279
      %445 = vmatpush.bf16.msra.mxu0 %v259
      %446 = vmatmul.bf16.gmra.mxu0 %v414
      %v447 = vpop.f32.mrf.mxu0
      %v448 = vadd.f32 %v429, %v447
      %v449 = vpop.f32.mrf.mxu0
      %v450 = vadd.f32 %v431, %v449
      %451 = vmatmul.bf16.gmra.mxu0 %v417
      %v452 = vpop.f32.mrf.mxu0
      %v453 = vadd.f32 %v434, %v452
      %v454 = vpop.f32.mrf.mxu0
      %v455 = vadd.f32 %v436, %v454
      %456 = vdwg.mxu0
      %v457 = vmax.f32 %v386, %v448
      %v458 = vmax.f32 %v387, %v450
      %v459 = vmax.f32 %v388, %v453
      %v460 = vmax.f32 %v389, %v455
      %s461 = scalar_lea.vmem %s165, 96
      %v462 = vld [vmem:[%s461] sm:$0xff]
      %v463 = vld [vmem:[%s461 + $0x8] sm:$0xff]
      %v464 = vld [vmem:[%s461 + $0x10] sm:$0xff]
      %v465 = vld [vmem:[%s461 + $0x18] sm:$0x11]
      %v470 = vunpack.c.l.b16 %v462
      %v471 = vunpack.c.h.b16 %v462
      %v472 = vunpack.c.l.b16 %v463
      %v473 = vunpack.c.h.b16 %v463
      %v474 = vunpack.c.l.b16 %v464
      %v475 = vunpack.c.h.b16 %v464
      %v476 = vunpack.c.l.b16 %v465
      %v477 = vunpack.c.h.b16 %v465
      %v478 = vpack.c.b16 %v472, %v470
      %v479 = vpack.c.b16 %v473, %v471
      %v480 = vpack.c.b16 %v476, %v474
      %v481 = vpack.c.b16 %v477, %v475
      %v485 = vsel %vm270, %v479, 0
      %v488 = vsel %vm270, %v481, 0
      %490 = vmatpush.bf16.msra.mxu0 %v258
      %491 = vmatpush.bf16.msra.mxu0 %v257
      %492 = vmatpush.bf16.msra.mxu0 %v256
      %493 = vmatpush.bf16.msra.mxu0 %v255
      %494 = vmatpush.bf16.msra.mxu0 %v254
      %495 = vmatpush.bf16.msra.mxu0 %v253
      %496 = vmatpush.bf16.msra.mxu0 %v252
      %497 = vmatpush.bf16.msra.mxu0 %v251
      %498 = vmatmul.bf16.gmra.mxu0 %v478
      %v499 = vpop.f32.mrf.mxu0
      %v500 = vadd.f32 0.0, %v499
      %v501 = vpop.f32.mrf.mxu0
      %v502 = vadd.f32 0.0, %v501
      %503 = vmatmul.bf16.gmra.mxu0 %v480
      %v504 = vpop.f32.mrf.mxu0
      %v505 = vadd.f32 0.0, %v504
      %v506 = vpop.f32.mrf.mxu0
      %v507 = vadd.f32 0.0, %v506
      %508 = vdwg.mxu0
      %509 = vmatpush.bf16.msra.mxu0 0
      %510 = vmatpush.bf16.msra.mxu0 0
      %511 = vmatpush.bf16.msra.mxu0 0
      %512 = vmatpush.bf16.msra.mxu0 0
      %513 = vmatpush.bf16.msra.mxu0 0
      %514 = vmatpush.bf16.msra.mxu0 0
      %515 = vmatpush.bf16.msra.mxu0 %v279
      %516 = vmatpush.bf16.msra.mxu0 %v259
      %517 = vmatmul.bf16.gmra.mxu0 %v485
      %v518 = vpop.f32.mrf.mxu0
      %v519 = vadd.f32 %v500, %v518
      %v520 = vpop.f32.mrf.mxu0
      %v521 = vadd.f32 %v502, %v520
      %522 = vmatmul.bf16.gmra.mxu0 %v488
      %v523 = vpop.f32.mrf.mxu0
      %v524 = vadd.f32 %v505, %v523
      %v525 = vpop.f32.mrf.mxu0
      %v526 = vadd.f32 %v507, %v525
      %527 = vdwg.mxu0
      %v528 = vmax.f32 %v457, %v519
      %v529 = vmax.f32 %v458, %v521
      %v530 = vmax.f32 %v459, %v524
      %v531 = vmax.f32 %v460, %v526
      %v532 = vld [vmem:[%s2] sm:$0x1]
      %v534 = vperm.slane %v532, 0
      %v536 = vadd.f32 %v528, %v534
      %v537 = vadd.f32 %v529, %v534
      %v538 = vadd.f32 %v530, %v534
      %v539 = vadd.f32 %v531, %v534
      %v540 = vmax.f32 %v536, 0.0
      %v541 = vmax.f32 %v537, 0.0
      %v542 = vmax.f32 %v538, 0.0
      %v543 = vmax.f32 %v539, 0.0
      %v544 = vpack.c.bf16 %v540, %v540
      %v545 = vpack.c.bf16 %v541, %v541
      %v546 = vpack.c.bf16 %v542, %v542
      %v547 = vpack.c.bf16 %v543, %v543
      %vm548 = vcmask 125952
      %549 = vst.msk [vmem:[%s170] sm:$0xf] %vm548, %v544
      %550 = vst.msk [vmem:[%s170 + $0x4] sm:$0xf] %vm548, %v545
      %551 = vst.msk [vmem:[%s170 + $0x8] sm:$0xf] %vm548, %v546
      %vm552 = vcmask 122880
      %vm553 = vsmask.f32 256
      %vm554 = vmand %vm552, %vm553
      %v555 = vld [vmem:[%s170 + $0xc] sm:$0x1]
      %v556 = vsel %vm554, %v547, %v555
      %557 = vst [vmem:[%s170 + $0xc] sm:$0x1] %v556
      %p558 = scmp.lt.s32.totalorder %s14, 1
      %s559 = scalar_select %p558, %s14, 1
      %s560 = smul.addr %s559, 4
      %s561 = smul.addr %s560, 4
      %s562 = scalar_lea.vmem %s3, %s561
      // Predicated region
      $region33: #{simplenet_forward.4} parent=31 // pred_check
        %p563 = pneg %p100
      $region34: #{simplenet_forward.4} parent=31 // pred_check_branch
        %565 = sbr.rel (%p563) target = $region36
      $region35: #{simplenet_forward.4} parent=31 // pred_region
        _
      $region36: #{simplenet_forward.4} parent=31 // pred_fallthru
        _
    $region32: #{simplenet_forward.4} parent=5 // pred_fallthru
      _
    %p566 = scmp.le.s32.totalorder 2, %s9
    // Predicated region
    $region37: #{simplenet_forward.4} parent=5 // pred_check
      %p567 = pneg %p566
    $region38: #{simplenet_forward.4} parent=5 // pred_check_branch
      %569 = sbr.rel (%p567) target = $region40
    $region39: #{simplenet_forward.4} parent=5 // pred_region
      %s570 = ssub.s32 %s9, 2
      // Predicated region
      $region41: #{simplenet_forward.4} parent=39 // pred_check
        %p571 = pneg %p106
      $region42: #{simplenet_forward.4} parent=39 // pred_check_branch
        %573 = sbr.rel (%p571) target = $region44
      $region43: #{simplenet_forward.4} parent=39 // pred_region
        %p574 = scmp.lt.s32.totalorder %s15, 1
        %s575 = scalar_select %p574, %s15, 1
        %s576 = smul.addr %s575, 4
        %s577 = smul.addr %s576, 4
        %s578 = scalar_lea.vmem %s3, %s577
      $region44: #{simplenet_forward.4} parent=39 // pred_fallthru
        _
    $region40: #{simplenet_forward.4} parent=5 // pred_fallthru
      _
  $region6: #{simplenet_forward.4} parent=0 // loop_footer
    %s13 = sadd.s32 1, %s9
  $region7: #{simplenet_forward.4} parent=0 // loop_footer_branch
    %8 = sbr.rel target = $region3
  $region8: #{simplenet_forward.4} parent=0 // loop_exit
    _

</llo_original>
